<compile_context>
chip_gen: v7x
topology: tpu7x:2x2x1
jax: 0.10.0
libtpu: 0.0.40
codegen_flags: <defaults>
</compile_context>

<pallas_src>
import functools

import jax
import jax.numpy as jnp
from jax.experimental import pallas as pl
from jax.experimental.pallas import tpu as pltpu


def _round_up(x, m):
    return (x + m - 1) // m * m


# --------------------------------------------------------------------------
# Kernel
# --------------------------------------------------------------------------
def fcnn_kernel(
    x_ref,
    w0_ref, b0_ref,
    w1_ref, b1_ref,
    w2_ref, b2_ref,
    w3_ref, b3_ref,
    wo_ref, bo_ref,
    o_ref,
    *, matmul_dtype,
):
    # Activations in matmul_dtype feed the MXU; accumulation is f32.
    h = x_ref[...].astype(matmul_dtype)

    # ---- 4x (Linear + folded-BN + ReLU) ----
    for w_ref, b_ref in ((w0_ref, b0_ref), (w1_ref, b1_ref),
                         (w2_ref, b2_ref), (w3_ref, b3_ref)):
        acc = jnp.dot(h, w_ref[...], preferred_element_type=jnp.float32)
        acc = jnp.maximum(acc + b_ref[...], 0.0)
        h = acc.astype(matmul_dtype)

    # Dropout1d: identity in eval mode.

    # ---- output layer (lane-padded to 128 columns) ----
    logits = jnp.dot(h, wo_ref[...], preferred_element_type=jnp.float32)
    logits = logits + bo_ref[...]          # padded columns carry a -1e30 bias

    # ---- softmax over the feature axis ----
    m = jnp.max(logits, axis=1, keepdims=True)
    e = jnp.exp(logits - m)                # padded columns underflow to 0
    denom = jnp.sum(e, axis=1, keepdims=True)
    o_ref[...] = (e * pl.reciprocal(denom, approx=True)).astype(o_ref.dtype)


# --------------------------------------------------------------------------
# Parameter preparation: fold BN + bias, pad output layer, cast matmul dtype
# --------------------------------------------------------------------------
def prepare_params(params, *, out_pad, matmul_dtype):
    prepped = {}
    for l in range(4):
        w, b = params[f"w{l}"], params[f"b{l}"]
        s, t = params[f"s{l}"], params[f"t{l}"]
        # y = (x @ w + b) * s + t  ==  x @ (w * s) + (b * s + t)
        prepped[f"w{l}"] = (w * s).astype(matmul_dtype)
        prepped[f"b{l}"] = (b * s + t).astype(jnp.float32)

    wo, bo = params["wo"], params["bo"]
    out_f = wo.shape[1]
    pad = out_pad - out_f
    wo_p = jnp.pad(wo, ((0, 0), (0, pad)))
    # Padded logits = 0 + (-1e30): exp underflows to exactly 0, so the softmax
    # over the padded width equals softmax over the real out_f columns.
    bo_p = jnp.pad(bo, ((0, 0), (0, pad)), constant_values=-1e30)
    prepped["wo"] = wo_p.astype(matmul_dtype)
    prepped["bo"] = bo_p.astype(jnp.float32)
    return prepped


# --------------------------------------------------------------------------
# Wrapper
# --------------------------------------------------------------------------
def fcnn_forward(x, params, *, batch_tile=512, matmul_dtype=jnp.bfloat16):
    """x: [N, in_features] float32.  params: raw dict from make_params."""
    n, in_f = x.shape
    out_f = params["wo"].shape[1]
    out_pad = _round_up(max(out_f, 128), 128)

    prepped = prepare_params(params, out_pad=out_pad, matmul_dtype=matmul_dtype)

    # Clamp/align the batch tile and pad the batch so the grid covers it.
    bt = min(_round_up(batch_tile, 8), _round_up(n, 8))
    n_pad = _round_up(n, bt)
    if n_pad != n:
        x = jnp.pad(x, ((0, n_pad - n), (0, 0)))

    def const2d(arr):
        # Full-array block with a constant index: stays resident across steps.
        return pl.BlockSpec(arr.shape, lambda i: (0, 0))

    flat_args = [x]
    in_specs = [pl.BlockSpec((bt, in_f), lambda i: (i, 0))]
    for l in range(4):
        flat_args += [prepped[f"w{l}"], prepped[f"b{l}"]]
        in_specs += [const2d(prepped[f"w{l}"]), const2d(prepped[f"b{l}"])]
    flat_args += [prepped["wo"], prepped["bo"]]
    in_specs += [const2d(prepped["wo"]), const2d(prepped["bo"])]

    out = pl.pallas_call(
        functools.partial(fcnn_kernel, matmul_dtype=matmul_dtype),
        out_shape=jax.ShapeDtypeStruct((n_pad, out_pad), jnp.float32),
        grid_spec=pltpu.PrefetchScalarGridSpec(
            num_scalar_prefetch=0,
            grid=(n_pad // bt,),
            in_specs=in_specs,
            out_specs=pl.BlockSpec((bt, out_pad), lambda i: (i, 0)),
        ),
        compiler_params=pltpu.CompilerParams(
            dimension_semantics=("parallel",)),
    )(*flat_args)

    return out[:n, :out_f]


# --------------------------------------------------------------------------
# Deterministic synthetic parameters + pure-JAX reference
# --------------------------------------------------------------------------
def make_params(key, in_features, out_features, hidden_size=128, num_hidden=3):
    """BatchNorm1d (eval mode) expressed as a per-feature scale/shift (s, t)."""
    eps = 1e-5
    params = {}
    dims = [(in_features, hidden_size)] + [(hidden_size, hidden_size)] * num_hidden
    keys = jax.random.split(key, 3 * (num_hidden + 1) + 2)
    ki = 0
    for l, (fi, fo) in enumerate(dims):
        params[f"w{l}"] = (jax.random.normal(keys[ki], (fi, fo), jnp.float32)
                           / jnp.sqrt(fi)); ki += 1
        params[f"b{l}"] = 0.01 * jax.random.normal(
            keys[ki], (1, fo), jnp.float32); ki += 1
        gamma = 1.0 + 0.1 * jax.random.normal(keys[ki], (1, fo), jnp.float32)
        ki += 1
        beta = jnp.zeros((1, fo), jnp.float32)
        running_mean = jnp.zeros((1, fo), jnp.float32)
        running_var = jnp.ones((1, fo), jnp.float32)
        s = gamma / jnp.sqrt(running_var + eps)
        t = beta - running_mean * s
        params[f"s{l}"] = s
        params[f"t{l}"] = t
    params["wo"] = (jax.random.normal(keys[ki], (hidden_size, out_features),
                                      jnp.float32) / jnp.sqrt(hidden_size))
    ki += 1
    params["bo"] = 0.01 * jax.random.normal(
        keys[ki], (1, out_features), jnp.float32)
    return params


def fcnn_reference(x, params):
    h = x @ params["w0"] + params["b0"]
    h = jnp.maximum(h * params["s0"] + params["t0"], 0.0)
    for l in range(1, 4):
        h = h @ params[f"w{l}"] + params[f"b{l}"]
        h = jnp.maximum(h * params[f"s{l}"] + params[f"t{l}"], 0.0)
    logits = h @ params["wo"] + params["bo"]
    return jax.nn.softmax(logits, axis=1)


# --------------------------------------------------------------------------
if __name__ == "__main__":
    in_features, out_features, hidden_size = 32, 8, 128
    batch = 256  # small demo size; 2 grid steps at tile=128 (feeds both v7x TCs)

    key = jax.random.PRNGKey(0)
    kx, kp = jax.random.split(key)
    x = jax.random.normal(kx, (batch, in_features), jnp.float32)
    params = make_params(kp, in_features, out_features, hidden_size)

    ref = fcnn_reference(x, params)

    # f32 matmul path: check against the pure-JAX reference.
    out_f32 = jax.block_until_ready(
        fcnn_forward(x, params, batch_tile=128, matmul_dtype=jnp.float32))
    assert out_f32.shape == (batch, out_features)
    assert jnp.allclose(jnp.sum(out_f32, axis=1), 1.0, atol=1e-2)
    assert jnp.allclose(out_f32, ref, atol=1e-2, rtol=1e-2)

    # bf16 MXU fast path (v6e/v7x): looser tolerance.
    out_bf16 = jax.block_until_ready(
        fcnn_forward(x, params, batch_tile=128, matmul_dtype=jnp.bfloat16))
    assert out_bf16.shape == (batch, out_features)
    assert jnp.allclose(jnp.sum(out_bf16, axis=1), 1.0, atol=1e-2)
    assert jnp.allclose(out_bf16, ref, atol=5e-2, rtol=5e-2)

    # Ragged batch (exercises the padding path in the wrapper).
    out_ragged = jax.block_until_ready(
        fcnn_forward(x[:100], params, batch_tile=128, matmul_dtype=jnp.float32))
    assert out_ragged.shape == (100, out_features)
    assert jnp.allclose(out_ragged, ref[:100], atol=1e-2, rtol=1e-2)

    print("KERNEL_OK")
</pallas_src>

<mosaic_0001>
module attributes {stable_mosaic.version = 11 : i64} {
  func.func @fcnn_kernel(%arg0: i32, %arg1: memref<128x32xf32, #tpu.memory_space<vmem>>, %arg2: memref<32x128xf32, #tpu.memory_space<vmem>>, %arg3: memref<1x128xf32, #tpu.memory_space<vmem>>, %arg4: memref<128x128xf32, #tpu.memory_space<vmem>>, %arg5: memref<1x128xf32, #tpu.memory_space<vmem>>, %arg6: memref<128x128xf32, #tpu.memory_space<vmem>>, %arg7: memref<1x128xf32, #tpu.memory_space<vmem>>, %arg8: memref<128x128xf32, #tpu.memory_space<vmem>>, %arg9: memref<1x128xf32, #tpu.memory_space<vmem>>, %arg10: memref<128x128xf32, #tpu.memory_space<vmem>>, %arg11: memref<1x128xf32, #tpu.memory_space<vmem>>, %arg12: memref<128x128xf32, #tpu.memory_space<vmem>>) attributes {dimension_semantics = [#tpu.dimension_semantics<parallel>], iteration_bounds = array<i64: 2>, scalar_prefetch = 0 : i64, scratch_operands = 0 : i64, tpu.core_type = #tpu.core_type<tc>, window_params = [{transform_indices = @transform_0, window_bounds = array<i64: 128, 32>}, {pipeline_mode = #tpu.pipeline_mode<synchronous>, transform_indices = @transform_1, window_bounds = array<i64: 32, 128>}, {pipeline_mode = #tpu.pipeline_mode<synchronous>, transform_indices = @transform_2, window_bounds = array<i64: 1, 128>}, {pipeline_mode = #tpu.pipeline_mode<synchronous>, transform_indices = @transform_3, window_bounds = array<i64: 128, 128>}, {pipeline_mode = #tpu.pipeline_mode<synchronous>, transform_indices = @transform_4, window_bounds = array<i64: 1, 128>}, {pipeline_mode = #tpu.pipeline_mode<synchronous>, transform_indices = @transform_5, window_bounds = array<i64: 128, 128>}, {pipeline_mode = #tpu.pipeline_mode<synchronous>, transform_indices = @transform_6, window_bounds = array<i64: 1, 128>}, {pipeline_mode = #tpu.pipeline_mode<synchronous>, transform_indices = @transform_7, window_bounds = array<i64: 128, 128>}, {pipeline_mode = #tpu.pipeline_mode<synchronous>, transform_indices = @transform_8, window_bounds = array<i64: 1, 128>}, {pipeline_mode = #tpu.pipeline_mode<synchronous>, transform_indices = @transform_9, window_bounds = array<i64: 128, 128>}, {pipeline_mode = #tpu.pipeline_mode<synchronous>, transform_indices = @transform_10, window_bounds = array<i64: 1, 128>}, {transform_indices = @transform_11, window_bounds = array<i64: 128, 128>}]} {
    %c0 = arith.constant 0 : index
    %c0_0 = arith.constant 0 : index
    %0 = vector.load %arg1[%c0, %c0_0] : memref<128x32xf32, #tpu.memory_space<vmem>>, vector<128x32xf32>
    %c0_1 = arith.constant 0 : index
    %c0_2 = arith.constant 0 : index
    %1 = vector.load %arg2[%c0_1, %c0_2] : memref<32x128xf32, #tpu.memory_space<vmem>>, vector<32x128xf32>
    %cst = arith.constant dense<0.000000e+00> : vector<128x128xf32>
    %2 = tpu.matmul %0, %1, %cst {dimension_numbers = #tpu.dot_dimension_numbers<[1], [0], [0], [1], [0, 0, 1, 1], [], []>} : vector<128x32xf32>, vector<32x128xf32>, vector<128x128xf32> -> vector<128x128xf32>
    %c0_3 = arith.constant 0 : index
    %c0_4 = arith.constant 0 : index
    %3 = vector.load %arg3[%c0_3, %c0_4] : memref<1x128xf32, #tpu.memory_space<vmem>>, vector<1x128xf32>
    %4 = vector.broadcast %3 : vector<1x128xf32> to vector<128x128xf32>
    %5 = arith.addf %2, %4 : vector<128x128xf32>
    %cst_5 = arith.constant 0.000000e+00 : f32
    %6 = vector.broadcast %cst_5 : f32 to vector<128x128xf32>
    %7 = arith.maximumf %5, %6 : vector<128x128xf32>
    %c0_6 = arith.constant 0 : index
    %c0_7 = arith.constant 0 : index
    %8 = vector.load %arg4[%c0_6, %c0_7] : memref<128x128xf32, #tpu.memory_space<vmem>>, vector<128x128xf32>
    %cst_8 = arith.constant dense<0.000000e+00> : vector<128x128xf32>
    %9 = tpu.matmul %7, %8, %cst_8 {dimension_numbers = #tpu.dot_dimension_numbers<[1], [0], [0], [1], [0, 0, 1, 1], [], []>} : vector<128x128xf32>, vector<128x128xf32>, vector<128x128xf32> -> vector<128x128xf32>
    %c0_9 = arith.constant 0 : index
    %c0_10 = arith.constant 0 : index
    %10 = vector.load %arg5[%c0_9, %c0_10] : memref<1x128xf32, #tpu.memory_space<vmem>>, vector<1x128xf32>
    %11 = vector.broadcast %10 : vector<1x128xf32> to vector<128x128xf32>
    %12 = arith.addf %9, %11 : vector<128x128xf32>
    %cst_11 = arith.constant 0.000000e+00 : f32
    %13 = vector.broadcast %cst_11 : f32 to vector<128x128xf32>
    %14 = arith.maximumf %12, %13 : vector<128x128xf32>
    %c0_12 = arith.constant 0 : index
    %c0_13 = arith.constant 0 : index
    %15 = vector.load %arg6[%c0_12, %c0_13] : memref<128x128xf32, #tpu.memory_space<vmem>>, vector<128x128xf32>
    %cst_14 = arith.constant dense<0.000000e+00> : vector<128x128xf32>
    %16 = tpu.matmul %14, %15, %cst_14 {dimension_numbers = #tpu.dot_dimension_numbers<[1], [0], [0], [1], [0, 0, 1, 1], [], []>} : vector<128x128xf32>, vector<128x128xf32>, vector<128x128xf32> -> vector<128x128xf32>
    %c0_15 = arith.constant 0 : index
    %c0_16 = arith.constant 0 : index
    %17 = vector.load %arg7[%c0_15, %c0_16] : memref<1x128xf32, #tpu.memory_space<vmem>>, vector<1x128xf32>
    %18 = vector.broadcast %17 : vector<1x128xf32> to vector<128x128xf32>
    %19 = arith.addf %16, %18 : vector<128x128xf32>
    %cst_17 = arith.constant 0.000000e+00 : f32
    %20 = vector.broadcast %cst_17 : f32 to vector<128x128xf32>
    %21 = arith.maximumf %19, %20 : vector<128x128xf32>
    %c0_18 = arith.constant 0 : index
    %c0_19 = arith.constant 0 : index
    %22 = vector.load %arg8[%c0_18, %c0_19] : memref<128x128xf32, #tpu.memory_space<vmem>>, vector<128x128xf32>
    %cst_20 = arith.constant dense<0.000000e+00> : vector<128x128xf32>
    %23 = tpu.matmul %21, %22, %cst_20 {dimension_numbers = #tpu.dot_dimension_numbers<[1], [0], [0], [1], [0, 0, 1, 1], [], []>} : vector<128x128xf32>, vector<128x128xf32>, vector<128x128xf32> -> vector<128x128xf32>
    %c0_21 = arith.constant 0 : index
    %c0_22 = arith.constant 0 : index
    %24 = vector.load %arg9[%c0_21, %c0_22] : memref<1x128xf32, #tpu.memory_space<vmem>>, vector<1x128xf32>
    %25 = vector.broadcast %24 : vector<1x128xf32> to vector<128x128xf32>
    %26 = arith.addf %23, %25 : vector<128x128xf32>
    %cst_23 = arith.constant 0.000000e+00 : f32
    %27 = vector.broadcast %cst_23 : f32 to vector<128x128xf32>
    %28 = arith.maximumf %26, %27 : vector<128x128xf32>
    %c0_24 = arith.constant 0 : index
    %c0_25 = arith.constant 0 : index
    %29 = vector.load %arg10[%c0_24, %c0_25] : memref<128x128xf32, #tpu.memory_space<vmem>>, vector<128x128xf32>
    %cst_26 = arith.constant dense<0.000000e+00> : vector<128x128xf32>
    %30 = tpu.matmul %28, %29, %cst_26 {dimension_numbers = #tpu.dot_dimension_numbers<[1], [0], [0], [1], [0, 0, 1, 1], [], []>} : vector<128x128xf32>, vector<128x128xf32>, vector<128x128xf32> -> vector<128x128xf32>
    %c0_27 = arith.constant 0 : index
    %c0_28 = arith.constant 0 : index
    %31 = vector.load %arg11[%c0_27, %c0_28] : memref<1x128xf32, #tpu.memory_space<vmem>>, vector<1x128xf32>
    %32 = vector.broadcast %31 : vector<1x128xf32> to vector<128x128xf32>
    %33 = arith.addf %30, %32 : vector<128x128xf32>
    %cst_29 = arith.constant dense<0xFF800000> : vector<128xf32>
    %34 = vector.multi_reduction <maximumf>, %33, %cst_29 [1] : vector<128x128xf32> to vector<128xf32>
    %35 = vector.shape_cast %34 : vector<128xf32> to vector<128x1xf32>
    %36 = vector.broadcast %35 : vector<128x1xf32> to vector<128x128xf32>
    %37 = arith.subf %33, %36 : vector<128x128xf32>
    %38 = math.exp %37 : vector<128x128xf32>
    %cst_30 = arith.constant dense<0.000000e+00> : vector<128xf32>
    %39 = vector.multi_reduction <add>, %38, %cst_30 [1] : vector<128x128xf32> to vector<128xf32>
    %40 = vector.shape_cast %39 : vector<128xf32> to vector<128x1xf32>
    %41 = tpu.reciprocal %40 {approx = true} : vector<128x1xf32> -> vector<128x1xf32>
    %42 = vector.broadcast %41 : vector<128x1xf32> to vector<128x128xf32>
    %43 = arith.mulf %38, %42 : vector<128x128xf32>
    %c0_31 = arith.constant 0 : index
    %c0_32 = arith.constant 0 : index
    %44 = vector.load %arg12[%c0_31, %c0_32] : memref<128x128xf32, #tpu.memory_space<vmem>>, vector<128x128xf32>
    tpu.vector_store %arg12[%c0_31, %c0_32], %43 {strides = array<i32>} : memref<128x128xf32, #tpu.memory_space<vmem>>, vector<128x128xf32>,
    return
  }
  func.func @transform_0(%arg0: i32) -> (i32, i32) {
    %c0_i32 = arith.constant 0 : i32
    %c0_i32_0 = arith.constant 0 : i32
    return %arg0, %c0_i32 : i32, i32
  }
  func.func @transform_1(%arg0: i32) -> (i32, i32) {
    %c0_i32 = arith.constant 0 : i32
    %c0_i32_0 = arith.constant 0 : i32
    %c0_i32_1 = arith.constant 0 : i32
    return %c0_i32, %c0_i32_0 : i32, i32
  }
  func.func @transform_2(%arg0: i32) -> (i32, i32) {
    %c0_i32 = arith.constant 0 : i32
    %c0_i32_0 = arith.constant 0 : i32
    %c0_i32_1 = arith.constant 0 : i32
    return %c0_i32, %c0_i32_0 : i32, i32
  }
  func.func @transform_3(%arg0: i32) -> (i32, i32) {
    %c0_i32 = arith.constant 0 : i32
    %c0_i32_0 = arith.constant 0 : i32
    %c0_i32_1 = arith.constant 0 : i32
    return %c0_i32, %c0_i32_0 : i32, i32
  }
  func.func @transform_4(%arg0: i32) -> (i32, i32) {
    %c0_i32 = arith.constant 0 : i32
    %c0_i32_0 = arith.constant 0 : i32
    %c0_i32_1 = arith.constant 0 : i32
    return %c0_i32, %c0_i32_0 : i32, i32
  }
  func.func @transform_5(%arg0: i32) -> (i32, i32) {
    %c0_i32 = arith.constant 0 : i32
    %c0_i32_0 = arith.constant 0 : i32
    %c0_i32_1 = arith.constant 0 : i32
    return %c0_i32, %c0_i32_0 : i32, i32
  }
  func.func @transform_6(%arg0: i32) -> (i32, i32) {
    %c0_i32 = arith.constant 0 : i32
    %c0_i32_0 = arith.constant 0 : i32
    %c0_i32_1 = arith.constant 0 : i32
    return %c0_i32, %c0_i32_0 : i32, i32
  }
  func.func @transform_7(%arg0: i32) -> (i32, i32) {
    %c0_i32 = arith.constant 0 : i32
    %c0_i32_0 = arith.constant 0 : i32
    %c0_i32_1 = arith.constant 0 : i32
    return %c0_i32, %c0_i32_0 : i32, i32
  }
  func.func @transform_8(%arg0: i32) -> (i32, i32) {
    %c0_i32 = arith.constant 0 : i32
    %c0_i32_0 = arith.constant 0 : i32
    %c0_i32_1 = arith.constant 0 : i32
    return %c0_i32, %c0_i32_0 : i32, i32
  }
  func.func @transform_9(%arg0: i32) -> (i32, i32) {
    %c0_i32 = arith.constant 0 : i32
    %c0_i32_0 = arith.constant 0 : i32
    %c0_i32_1 = arith.constant 0 : i32
    return %c0_i32, %c0_i32_0 : i32, i32
  }
  func.func @transform_10(%arg0: i32) -> (i32, i32) {
    %c0_i32 = arith.constant 0 : i32
    %c0_i32_0 = arith.constant 0 : i32
    %c0_i32_1 = arith.constant 0 : i32
    return %c0_i32, %c0_i32_0 : i32, i32
  }
  func.func @transform_11(%arg0: i32) -> (i32, i32) {
    %c0_i32 = arith.constant 0 : i32
    %c0_i32_0 = arith.constant 0 : i32
    return %arg0, %c0_i32 : i32, i32
  }
}

</mosaic_0001>

<llo_original>
// kernel: tpu_custom_call.1
$region0: #{tpu_custom_call.1}
  #allocation0 [shape = 'u32[]', space=smem, size = 0x4, offset = 0x4, fixed_abs, tag = 'smem constant byte address 0x4 - core index']
  #allocation1 [shape = 'u32[144,128]{1,0:T(1,128)}', space=vmem, size = 0x12000, scoped, tag = 'internal scratch']
  %s0 = inlined_call_operand.vmem [shape: f32[256,32], index: 0, kind: input, shape index: {}]
  %s1 = inlined_call_operand.vmem [shape: f32[32,128], index: 1, kind: input, shape index: {}]
  %s2 = inlined_call_operand.vmem [shape: f32[1,128], index: 2, kind: input, shape index: {}]
  %s3 = inlined_call_operand.vmem [shape: f32[128,128], index: 3, kind: input, shape index: {}]
  %s4 = inlined_call_operand.vmem [shape: f32[1,128], index: 4, kind: input, shape index: {}]
  %s5 = inlined_call_operand.vmem [shape: f32[128,128], index: 5, kind: input, shape index: {}]
  %s6 = inlined_call_operand.vmem [shape: f32[1,128], index: 6, kind: input, shape index: {}]
  %s7 = inlined_call_operand.hbm [shape: f32[128,128], index: 7, kind: input, shape index: {}]
  %s8 = inlined_call_operand.vmem [shape: f32[1,128], index: 8, kind: input, shape index: {}]
  %s9 = inlined_call_operand.hbm [shape: f32[128,128], index: 9, kind: input, shape index: {}]
  %s10 = inlined_call_operand.vmem [shape: f32[1,128], index: 10, kind: input, shape index: {}]
  %s11 = inlined_call_operand.hbm [shape: f32[256,128], index: 11, kind: output, shape index: {}]
  %s12 = sld [smem:[#allocation0]]
  $region85: #{tpu_custom_call.1} parent=0
    _
  %s14 = ssub.s32 1, %s12
  %s15 = scalar_select 0, %s14, %s12
  $region1: #{tpu_custom_call.1} parent=0
    #allocation2 [shape = 'u8[65536]{0}', space=vmem, size = 0x10000, scoped, tag = 'input window, operand 7, single buffered']
    #allocation3 [shape = 's32[2]{0}', space=sflag, size = 0x8, scoped, tag = 'scoped memory for tpu_custom_call.1']
    #allocation4 [shape = 's32[2]{0}', space=sflag, size = 0x8, scoped, tag = 'scoped memory for tpu_custom_call.1']
    #allocation5 [shape = 'u8[65536]{0}', space=vmem, size = 0x10000, scoped, tag = 'input window, operand 9, single buffered']
    #allocation6 [shape = 's32[1]{0}', space=sflag, size = 0x4, scoped, tag = 'scoped memory for tpu_custom_call.1']
    #allocation7 [shape = 'u8[131072]{0}', space=vmem, size = 0x20000, scoped, tag = 'output window, operand 0']
    %16 = vsyncpa [#allocation3], 0
    %17 = vsyncpa [#allocation6], 0
    %18 = vsyncpa [#allocation4], 0
    %s19 = scalar_lea.sflag [#allocation4], 1
    %20 = vsyncpa %s19, 0
    loop: start=0, step=1, limit=4
    $region2: #{tpu_custom_call.1} parent=1 // loop_pre_header
      _
    $region3: #{tpu_custom_call.1} parent=1 // loop_header
      %s22 = sphi 0, %s26
      %p23 = scmp.ge.s32.totalorder %s22, 4
      %s32 = sphi 0, %s34
      %s35 = sphi 0, %s32
      %s36 = sphi 0, %s35
      %s52 = sphi 0, %s36
      %s56 = sphi 0, %s56
      %s58 = sphi 0, %s56
      %s59 = sphi 0, %s58
      %s73 = sphi 0, %s59
      %s77 = sphi 0, %s77
      %s79 = sphi 0, %s77
      %s80 = sphi 0, %s79
      %s94 = sphi 0, %s80
      %s98 = sphi 0, %s98
      %s100 = sphi 0, %s98
      %s101 = sphi 0, %s100
      %s115 = sphi 0, %s101
      %s119 = sphi 0, %s119
      %s121 = sphi 0, %s119
      %s122 = sphi 0, %s121
      %s136 = sphi 0, %s122
      %s140 = sphi 0, %s140
      %s142 = sphi 0, %s140
      %s143 = sphi 0, %s142
      %s157 = sphi 0, %s143
      %s161 = sphi 0, %s161
      %s163 = sphi 0, %s161
      %s164 = sphi 0, %s163
      %s178 = sphi 0, %s164
      %s182 = sphi 0, %s182
      %s184 = sphi 0, %s182
      %s185 = sphi 0, %s184
      %s199 = sphi 0, %s185
      %s203 = sphi 0, %s203
      %s205 = sphi 0, %s203
      %s206 = sphi 0, %s205
      %s220 = sphi 0, %s206
      %s224 = sphi 0, %s224
      %s226 = sphi 0, %s224
      %s227 = sphi 0, %s226
      %s241 = sphi 0, %s227
      %s245 = sphi 0, %s245
      %s247 = sphi 0, %s245
      %s248 = sphi 0, %s247
      %s262 = sphi 0, %s248
      %s268 = sphi 0, %s270
      %s271 = sphi 0, %s268
      %s272 = sphi 0, %s271
      %s288 = sphi 0, %s272
    $region4: #{tpu_custom_call.1} parent=1 // loop_header_branch
      %25 = sbr.rel (%p23) target = $region8
    $region5: #{tpu_custom_call.1} parent=1 // loop_body
      %s27 = ssub.s32 %s22, 1
      %s28 = ssub.s32 %s22, 2
      %s29 = sadd.s32 %s22, 1
      %s30 = ssub.s32 %s22, %s29
      %p31 = scmp.eq.s32.totalorder %s30, 0
      %s33 = sadd.s32 %s32, 1
      %s34 = scalar_select %p31, %s32, %s33
      %p37 = pneg %p31
      %p38 = scmp.eq.s32.totalorder %s22, 1
      %p39 = por %p37, %p38
      %p40 = scmp.ne.s32.totalorder %s32, %s35
      %p41 = scmp.eq.s32.totalorder %s22, 0
      %p42 = por %p40, %p41
      %p43 = scmp.ne.s32.totalorder %s32, %s35
      %p44 = scmp.eq.s32.totalorder %s27, 1
      %p45 = por %p43, %p44
      %p46 = scmp.ne.s32.totalorder %s35, %s36
      %p47 = scmp.eq.s32.totalorder %s27, 0
      %p48 = por %p46, %p47
      %p49 = scmp.ne.s32.totalorder %s35, %s36
      %p50 = scmp.eq.s32.totalorder %s28, 1
      %p51 = por %p49, %p50
      %p53 = scmp.ne.s32.totalorder %s36, %s52
      %p54 = scmp.eq.s32.totalorder %s28, 0
      %p55 = por %p53, %p54
      %s57 = sadd.s32 %s56, 1
      %p60 = scmp.eq.s32.totalorder %s22, 1
      %p61 = scmp.ne.s32.totalorder %s56, %s58
      %p62 = scmp.eq.s32.totalorder %s22, 0
      %p63 = por %p61, %p62
      %p64 = scmp.ne.s32.totalorder %s56, %s58
      %p65 = scmp.eq.s32.totalorder %s27, 1
      %p66 = por %p64, %p65
      %p67 = scmp.ne.s32.totalorder %s58, %s59
      %p68 = scmp.eq.s32.totalorder %s27, 0
      %p69 = por %p67, %p68
      %p70 = scmp.ne.s32.totalorder %s58, %s59
      %p71 = scmp.eq.s32.totalorder %s28, 1
      %p72 = por %p70, %p71
      %p74 = scmp.ne.s32.totalorder %s59, %s73
      %p75 = scmp.eq.s32.totalorder %s28, 0
      %p76 = por %p74, %p75
      %s78 = sadd.s32 %s77, 1
      %p81 = scmp.eq.s32.totalorder %s22, 1
      %p82 = scmp.ne.s32.totalorder %s77, %s79
      %p83 = scmp.eq.s32.totalorder %s22, 0
      %p84 = por %p82, %p83
      %p85 = scmp.ne.s32.totalorder %s77, %s79
      %p86 = scmp.eq.s32.totalorder %s27, 1
      %p87 = por %p85, %p86
      %p88 = scmp.ne.s32.totalorder %s79, %s80
      %p89 = scmp.eq.s32.totalorder %s27, 0
      %p90 = por %p88, %p89
      %p91 = scmp.ne.s32.totalorder %s79, %s80
      %p92 = scmp.eq.s32.totalorder %s28, 1
      %p93 = por %p91, %p92
      %p95 = scmp.ne.s32.totalorder %s80, %s94
      %p96 = scmp.eq.s32.totalorder %s28, 0
      %p97 = por %p95, %p96
      %s99 = sadd.s32 %s98, 1
      %p102 = scmp.eq.s32.totalorder %s22, 1
      %p103 = scmp.ne.s32.totalorder %s98, %s100
      %p104 = scmp.eq.s32.totalorder %s22, 0
      %p105 = por %p103, %p104
      %p106 = scmp.ne.s32.totalorder %s98, %s100
      %p107 = scmp.eq.s32.totalorder %s27, 1
      %p108 = por %p106, %p107
      %p109 = scmp.ne.s32.totalorder %s100, %s101
      %p110 = scmp.eq.s32.totalorder %s27, 0
      %p111 = por %p109, %p110
      %p112 = scmp.ne.s32.totalorder %s100, %s101
      %p113 = scmp.eq.s32.totalorder %s28, 1
      %p114 = por %p112, %p113
      %p116 = scmp.ne.s32.totalorder %s101, %s115
      %p117 = scmp.eq.s32.totalorder %s28, 0
      %p118 = por %p116, %p117
      %s120 = sadd.s32 %s119, 1
      %p123 = scmp.eq.s32.totalorder %s22, 1
      %p124 = scmp.ne.s32.totalorder %s119, %s121
      %p125 = scmp.eq.s32.totalorder %s22, 0
      %p126 = por %p124, %p125
      %p127 = scmp.ne.s32.totalorder %s119, %s121
      %p128 = scmp.eq.s32.totalorder %s27, 1
      %p129 = por %p127, %p128
      %p130 = scmp.ne.s32.totalorder %s121, %s122
      %p131 = scmp.eq.s32.totalorder %s27, 0
      %p132 = por %p130, %p131
      %p133 = scmp.ne.s32.totalorder %s121, %s122
      %p134 = scmp.eq.s32.totalorder %s28, 1
      %p135 = por %p133, %p134
      %p137 = scmp.ne.s32.totalorder %s122, %s136
      %p138 = scmp.eq.s32.totalorder %s28, 0
      %p139 = por %p137, %p138
      %s141 = sadd.s32 %s140, 1
      %p144 = scmp.eq.s32.totalorder %s22, 1
      %p145 = scmp.ne.s32.totalorder %s140, %s142
      %p146 = scmp.eq.s32.totalorder %s22, 0
      %p147 = por %p145, %p146
      %p148 = scmp.ne.s32.totalorder %s140, %s142
      %p149 = scmp.eq.s32.totalorder %s27, 1
      %p150 = por %p148, %p149
      %p151 = scmp.ne.s32.totalorder %s142, %s143
      %p152 = scmp.eq.s32.totalorder %s27, 0
      %p153 = por %p151, %p152
      %p154 = scmp.ne.s32.totalorder %s142, %s143
      %p155 = scmp.eq.s32.totalorder %s28, 1
      %p156 = por %p154, %p155
      %p158 = scmp.ne.s32.totalorder %s143, %s157
      %p159 = scmp.eq.s32.totalorder %s28, 0
      %p160 = por %p158, %p159
      %s162 = sadd.s32 %s161, 1
      %p165 = scmp.eq.s32.totalorder %s22, 1
      %p166 = scmp.ne.s32.totalorder %s161, %s163
      %p167 = scmp.eq.s32.totalorder %s22, 0
      %p168 = por %p166, %p167
      %p169 = scmp.ne.s32.totalorder %s161, %s163
      %p170 = scmp.eq.s32.totalorder %s27, 1
      %p171 = por %p169, %p170
      %p172 = scmp.ne.s32.totalorder %s163, %s164
      %p173 = scmp.eq.s32.totalorder %s27, 0
      %p174 = por %p172, %p173
      %p175 = scmp.ne.s32.totalorder %s163, %s164
      %p176 = scmp.eq.s32.totalorder %s28, 1
      %p177 = por %p175, %p176
      %p179 = scmp.ne.s32.totalorder %s164, %s178
      %p180 = scmp.eq.s32.totalorder %s28, 0
      %p181 = por %p179, %p180
      %s183 = sadd.s32 %s182, 1
      %p186 = scmp.eq.s32.totalorder %s22, 1
      %p187 = scmp.ne.s32.totalorder %s182, %s184
      %p188 = scmp.eq.s32.totalorder %s22, 0
      %p189 = por %p187, %p188
      %p190 = scmp.ne.s32.totalorder %s182, %s184
      %p191 = scmp.eq.s32.totalorder %s27, 1
      %p192 = por %p190, %p191
      %p193 = scmp.ne.s32.totalorder %s184, %s185
      %p194 = scmp.eq.s32.totalorder %s27, 0
      %p195 = por %p193, %p194
      %p196 = scmp.ne.s32.totalorder %s184, %s185
      %p197 = scmp.eq.s32.totalorder %s28, 1
      %p198 = por %p196, %p197
      %p200 = scmp.ne.s32.totalorder %s185, %s199
      %p201 = scmp.eq.s32.totalorder %s28, 0
      %p202 = por %p200, %p201
      %s204 = sadd.s32 %s203, 1
      %p207 = scmp.eq.s32.totalorder %s22, 1
      %p208 = scmp.ne.s32.totalorder %s203, %s205
      %p209 = scmp.eq.s32.totalorder %s22, 0
      %p210 = por %p208, %p209
      %p211 = scmp.ne.s32.totalorder %s203, %s205
      %p212 = scmp.eq.s32.totalorder %s27, 1
      %p213 = por %p211, %p212
      %p214 = scmp.ne.s32.totalorder %s205, %s206
      %p215 = scmp.eq.s32.totalorder %s27, 0
      %p216 = por %p214, %p215
      %p217 = scmp.ne.s32.totalorder %s205, %s206
      %p218 = scmp.eq.s32.totalorder %s28, 1
      %p219 = por %p217, %p218
      %p221 = scmp.ne.s32.totalorder %s206, %s220
      %p222 = scmp.eq.s32.totalorder %s28, 0
      %p223 = por %p221, %p222
      %s225 = sadd.s32 %s224, 1
      %p228 = scmp.eq.s32.totalorder %s22, 1
      %p229 = scmp.ne.s32.totalorder %s224, %s226
      %p230 = scmp.eq.s32.totalorder %s22, 0
      %p231 = por %p229, %p230
      %p232 = scmp.ne.s32.totalorder %s224, %s226
      %p233 = scmp.eq.s32.totalorder %s27, 1
      %p234 = por %p232, %p233
      %p235 = scmp.ne.s32.totalorder %s226, %s227
      %p236 = scmp.eq.s32.totalorder %s27, 0
      %p237 = por %p235, %p236
      %p238 = scmp.ne.s32.totalorder %s226, %s227
      %p239 = scmp.eq.s32.totalorder %s28, 1
      %p240 = por %p238, %p239
      %p242 = scmp.ne.s32.totalorder %s227, %s241
      %p243 = scmp.eq.s32.totalorder %s28, 0
      %p244 = por %p242, %p243
      %s246 = sadd.s32 %s245, 1
      %p249 = scmp.eq.s32.totalorder %s22, 1
      %p250 = scmp.ne.s32.totalorder %s245, %s247
      %p251 = scmp.eq.s32.totalorder %s22, 0
      %p252 = por %p250, %p251
      %p253 = scmp.ne.s32.totalorder %s245, %s247
      %p254 = scmp.eq.s32.totalorder %s27, 1
      %p255 = por %p253, %p254
      %p256 = scmp.ne.s32.totalorder %s247, %s248
      %p257 = scmp.eq.s32.totalorder %s27, 0
      %p258 = por %p256, %p257
      %p259 = scmp.ne.s32.totalorder %s247, %s248
      %p260 = scmp.eq.s32.totalorder %s28, 1
      %p261 = por %p259, %p260
      %p263 = scmp.ne.s32.totalorder %s248, %s262
      %p264 = scmp.eq.s32.totalorder %s28, 0
      %p265 = por %p263, %p264
      %s266 = ssub.s32 %s22, %s29
      %p267 = scmp.eq.s32.totalorder %s266, 0
      %s269 = sadd.s32 %s268, 1
      %s270 = scalar_select %p267, %s268, %s269
      %p273 = pneg %p267
      %p274 = scmp.eq.s32.totalorder %s22, 1
      %p275 = por %p273, %p274
      %p276 = scmp.ne.s32.totalorder %s268, %s271
      %p277 = scmp.eq.s32.totalorder %s22, 0
      %p278 = por %p276, %p277
      %p279 = scmp.ne.s32.totalorder %s268, %s271
      %p280 = scmp.eq.s32.totalorder %s27, 1
      %p281 = por %p279, %p280
      %p282 = scmp.ne.s32.totalorder %s271, %s272
      %p283 = scmp.eq.s32.totalorder %s27, 0
      %p284 = por %p282, %p283
      %p285 = scmp.ne.s32.totalorder %s271, %s272
      %p286 = scmp.eq.s32.totalorder %s28, 1
      %p287 = por %p285, %p286
      %p289 = scmp.ne.s32.totalorder %s272, %s288
      %p290 = scmp.eq.s32.totalorder %s28, 0
      %p291 = por %p289, %p290
      %p292 = scmp.le.s32.totalorder 1, %s22
      %p293 = scmp.lt.s32.totalorder %s22, 3
      %p294 = pnand %p292, %p293
      %p295 = pneg %p294
      // Predicated region
      $region9: #{tpu_custom_call.1} parent=5 // pred_check
        _
      $region10: #{tpu_custom_call.1} parent=5 // pred_check_branch
        %297 = sbr.rel (%p294) target = $region12
      $region11: #{tpu_custom_call.1} parent=5 // pred_region
        %s298 = ssub.s32 %s22, 1
        // Predicated region
        $region13: #{tpu_custom_call.1} parent=11 // pred_check
          %p299 = pneg %p69
        $region14: #{tpu_custom_call.1} parent=11 // pred_check_branch
          %301 = sbr.rel (%p299) target = $region16
        $region15: #{tpu_custom_call.1} parent=11 // pred_region
          _
        $region16: #{tpu_custom_call.1} parent=11 // pred_fallthru
          _
        // Predicated region
        $region17: #{tpu_custom_call.1} parent=11 // pred_check
          %p302 = pneg %p90
        $region18: #{tpu_custom_call.1} parent=11 // pred_check_branch
          %304 = sbr.rel (%p302) target = $region20
        $region19: #{tpu_custom_call.1} parent=11 // pred_region
          _
        $region20: #{tpu_custom_call.1} parent=11 // pred_fallthru
          _
        // Predicated region
        $region21: #{tpu_custom_call.1} parent=11 // pred_check
          %p305 = pneg %p111
        $region22: #{tpu_custom_call.1} parent=11 // pred_check_branch
          %307 = sbr.rel (%p305) target = $region24
        $region23: #{tpu_custom_call.1} parent=11 // pred_region
          _
        $region24: #{tpu_custom_call.1} parent=11 // pred_fallthru
          _
        // Predicated region
        $region25: #{tpu_custom_call.1} parent=11 // pred_check
          %p308 = pneg %p132
        $region26: #{tpu_custom_call.1} parent=11 // pred_check_branch
          %310 = sbr.rel (%p308) target = $region28
        $region27: #{tpu_custom_call.1} parent=11 // pred_region
          _
        $region28: #{tpu_custom_call.1} parent=11 // pred_fallthru
          _
        // Predicated region
        $region29: #{tpu_custom_call.1} parent=11 // pred_check
          %p311 = pneg %p153
        $region30: #{tpu_custom_call.1} parent=11 // pred_check_branch
          %313 = sbr.rel (%p311) target = $region32
        $region31: #{tpu_custom_call.1} parent=11 // pred_region
          _
        $region32: #{tpu_custom_call.1} parent=11 // pred_fallthru
          _
        // Predicated region
        $region33: #{tpu_custom_call.1} parent=11 // pred_check
          %p314 = pneg %p174
        $region34: #{tpu_custom_call.1} parent=11 // pred_check_branch
          %316 = sbr.rel (%p314) target = $region36
        $region35: #{tpu_custom_call.1} parent=11 // pred_region
          _
        $region36: #{tpu_custom_call.1} parent=11 // pred_fallthru
          _
        // Predicated region
        $region37: #{tpu_custom_call.1} parent=11 // pred_check
          %p317 = pneg %p195
        $region38: #{tpu_custom_call.1} parent=11 // pred_check_branch
          %319 = sbr.rel (%p317) target = $region40
        $region39: #{tpu_custom_call.1} parent=11 // pred_region
          %s321 = ssub.s32 2048, 2048
          %322 = vsyncadd [#allocation3], %s321
          %s323 = sshll.u32 [#allocation2], 4
          %s324 = int_to_ptr.vmem [resolvable:$true] %s323
          %329 = dma.hbm_to_vmem [thread:$0]  %s7, 2048, %s324, [#allocation3], 128, 128, 8
        $region40: #{tpu_custom_call.1} parent=11 // pred_fallthru
          _
        // Predicated region
        $region41: #{tpu_custom_call.1} parent=11 // pred_check
          %p330 = pneg %p216
        $region42: #{tpu_custom_call.1} parent=11 // pred_check_branch
          %332 = sbr.rel (%p330) target = $region44
        $region43: #{tpu_custom_call.1} parent=11 // pred_region
          _
        $region44: #{tpu_custom_call.1} parent=11 // pred_fallthru
          _
        // Predicated region
        $region45: #{tpu_custom_call.1} parent=11 // pred_check
          %p333 = pneg %p237
        $region46: #{tpu_custom_call.1} parent=11 // pred_check_branch
          %335 = sbr.rel (%p333) target = $region48
        $region47: #{tpu_custom_call.1} parent=11 // pred_region
          %s337 = ssub.s32 2048, 2048
          %338 = vsyncadd [#allocation6], %s337
          %s339 = sshll.u32 [#allocation5], 4
          %s340 = int_to_ptr.vmem [resolvable:$true] %s339
          %345 = dma.hbm_to_vmem [thread:$0]  %s9, 2048, %s340, [#allocation6], 128, 128, 8
        $region48: #{tpu_custom_call.1} parent=11 // pred_fallthru
          _
        // Predicated region
        $region49: #{tpu_custom_call.1} parent=11 // pred_check
          %p346 = pneg %p258
        $region50: #{tpu_custom_call.1} parent=11 // pred_check_branch
          %348 = sbr.rel (%p346) target = $region52
        $region51: #{tpu_custom_call.1} parent=11 // pred_region
          _
        $region52: #{tpu_custom_call.1} parent=11 // pred_fallthru
          _
      $region12: #{tpu_custom_call.1} parent=5 // pred_fallthru
        _
      %p349 = scmp.lt.s32.totalorder %s22, 2
      // Predicated region
      $region53: #{tpu_custom_call.1} parent=5 // pred_check
        %p350 = pneg %p349
      $region54: #{tpu_custom_call.1} parent=5 // pred_check_branch
        %352 = sbr.rel (%p350) target = $region56
      $region55: #{tpu_custom_call.1} parent=5 // pred_region
        // Predicated region
        $region57: #{tpu_custom_call.1} parent=55 // pred_check
          %p353 = pneg %p42
        $region58: #{tpu_custom_call.1} parent=55 // pred_check_branch
          %355 = sbr.rel (%p353) target = $region60
        $region59: #{tpu_custom_call.1} parent=55 // pred_region
          %s356 = smul.u32 16, %s22
          %p357 = scmp.lt.s32.totalorder %s356, 31
          %s358 = scalar_select %p357, %s356, 31
          %s359 = smul.addr %s358, 8
          %s360 = scalar_lea.vmem %s0, %s359
          %s361 = smul.u32 16, %s22
        $region60: #{tpu_custom_call.1} parent=55 // pred_fallthru
          _
      $region56: #{tpu_custom_call.1} parent=5 // pred_fallthru
        _
      %p362 = scmp.le.s32.totalorder 1, %s22
      %p363 = scmp.lt.s32.totalorder %s22, 3
      %p364 = pnand %p362, %p363
      %p365 = pneg %p364
      // Predicated region
      $region61: #{tpu_custom_call.1} parent=5 // pred_check
        _
      $region62: #{tpu_custom_call.1} parent=5 // pred_check_branch
        %367 = sbr.rel (%p364) target = $region64
      $region63: #{tpu_custom_call.1} parent=5 // pred_region
        %s368 = ssub.s32 %s22, 1
        // Predicated region
        $region65: #{tpu_custom_call.1} parent=63 // pred_check
          %p369 = pneg %p195
        $region66: #{tpu_custom_call.1} parent=63 // pred_check_branch
          %371 = sbr.rel (%p369) target = $region68
        $region67: #{tpu_custom_call.1} parent=63 // pred_region
          %372 = dma.done [#allocation3], 2048
        $region68: #{tpu_custom_call.1} parent=63 // pred_fallthru
          _
        // Predicated region
        $region69: #{tpu_custom_call.1} parent=63 // pred_check
          %p373 = pneg %p237
        $region70: #{tpu_custom_call.1} parent=63 // pred_check_branch
          %375 = sbr.rel (%p373) target = $region72
        $region71: #{tpu_custom_call.1} parent=63 // pred_region
          %376 = dma.done [#allocation6], 2048
        $region72: #{tpu_custom_call.1} parent=63 // pred_fallthru
          _
        %s377 = smul.u32 16, %s27
        %p378 = scmp.lt.s32.totalorder %s377, 31
        %s379 = scalar_select %p378, %s377, 31
        %s380 = smul.addr %s379, 8
        %s381 = scalar_lea.vmem %s0, %s380
        %p382 = pneg %p48
        %p383 = pneg %p45
        %p384 = pneg %p69
        %p385 = pneg %p66
        %p386 = pneg %p90
        %p387 = pneg %p87
        %p388 = pneg %p111
        %p389 = pneg %p108
        %p390 = pneg %p132
        %p391 = pneg %p129
        %p392 = pneg %p153
        %p393 = pneg %p150
        %p394 = pneg %p174
        %p395 = pneg %p171
        %p396 = pneg %p195
        %p397 = pneg %p192
        %p398 = pneg %p216
        %p399 = pneg %p213
        %p400 = pneg %p237
        %p401 = pneg %p234
        %p402 = pneg %p258
        %p403 = pneg %p255
        %p404 = pneg %p284
        %p405 = pneg %p281
        %s406 = sand.u32 %s271, 1
        %s407 = scalar_lea.sflag [#allocation4], %s406
        %s408 = sand.u32 %s271, 1
        %s409 = smul.addr %s408, 128
        %s410 = scalar_lea.vmem [#allocation7], %s409
        %s411 = smul.u32 16, %s27
        %p412 = scmp.lt.s32.totalorder %s411, 31
        %s413 = scalar_select %p412, %s411, 31
        %s414 = smul.addr %s413, 8
        %s415 = scalar_lea.vmem %s0, %s414
        %s416 = smul.u32 16, %s27
        %s417 = smul.u32 16, %s27
        %v418 = vld [vmem:[%s415] sm:$0xff]
        %v419 = vld [vmem:[%s415 + $0x8] sm:$0xff]
        %v420 = vld [vmem:[%s415 + $0x10] sm:$0xff]
        %v421 = vld [vmem:[%s415 + $0x18] sm:$0xff]
        %v422 = vld [vmem:[%s415 + $0x20] sm:$0xff]
        %v423 = vld [vmem:[%s415 + $0x28] sm:$0xff]
        %v424 = vld [vmem:[%s415 + $0x30] sm:$0xff]
        %v425 = vld [vmem:[%s415 + $0x38] sm:$0xff]
        %v426 = vld [vmem:[%s415 + $0x40] sm:$0xff]
        %v427 = vld [vmem:[%s415 + $0x48] sm:$0xff]
        %v428 = vld [vmem:[%s415 + $0x50] sm:$0xff]
        %v429 = vld [vmem:[%s415 + $0x58] sm:$0xff]
        %v430 = vld [vmem:[%s415 + $0x60] sm:$0xff]
        %v431 = vld [vmem:[%s415 + $0x68] sm:$0xff]
        %v432 = vld [vmem:[%s415 + $0x70] sm:$0xff]
        %v433 = vld [vmem:[%s415 + $0x78] sm:$0xff]
        %v434 = vld [vmem:[%s1] sm:$0xff]
        %v435 = vld [vmem:[%s1 + $0x8] sm:$0xff]
        %v436 = vld [vmem:[%s1 + $0x10] sm:$0xff]
        %v437 = vld [vmem:[%s1 + $0x18] sm:$0xff]
        %v438 = vld [vmem:[%s2] sm:$0x1]
        %v440 = vlaneseq
        %v441 = vshrl.u32 %v440, 7
        %v442 = vsub.s32 0, %v441
        %v443 = vrot.slane %v438, %v442
        %vm445 = vcmask 261120
        %v447 = vsel %vm445, %v418, 0
        %v450 = vsel %vm445, %v419, 0
        %v453 = vsel %vm445, %v420, 0
        %v456 = vsel %vm445, %v421, 0
        %v459 = vsel %vm445, %v422, 0
        %v462 = vsel %vm445, %v423, 0
        %v465 = vsel %vm445, %v424, 0
        %v468 = vsel %vm445, %v425, 0
        %v471 = vsel %vm445, %v426, 0
        %v474 = vsel %vm445, %v427, 0
        %v477 = vsel %vm445, %v428, 0
        %v480 = vsel %vm445, %v429, 0
        %v483 = vsel %vm445, %v430, 0
        %v486 = vsel %vm445, %v431, 0
        %v489 = vsel %vm445, %v432, 0
        %v492 = vsel %vm445, %v433, 0
        %494 = vmatprep.subr.mxu0 0.0
        %495 = vmatpush1.msra.mxu0 %v434
        %496 = vmatprep.subr.mxu0 0.0
        %497 = vmatpush1.msra.mxu0 %v435
        %498 = vmatprep.subr.mxu0 0.0
        %499 = vmatpush1.msra.mxu0 %v436
        %500 = vmatprep.subr.mxu0 0.0
        %501 = vmatpush1.msra.mxu0 %v437
        %502 = vmatprep.subr.mxu0 0.0
        %503 = vmatpush1.msra.mxu0 0.0
        %504 = vmatprep.subr.mxu0 0.0
        %505 = vmatpush1.msra.mxu0 0.0
        %506 = vmatprep.subr.mxu0 0.0
        %507 = vmatpush1.msra.mxu0 0.0
        %508 = vmatprep.subr.mxu0 0.0
        %509 = vmatpush1.msra.mxu0 0.0
        %510 = vmatprep.subr.mxu0 0.0
        %511 = vmatpush1.msra.mxu0 0.0
        %512 = vmatprep.subr.mxu0 0.0
        %513 = vmatpush1.msra.mxu0 0.0
        %514 = vmatprep.subr.mxu0 0.0
        %515 = vmatpush1.msra.mxu0 0.0
        %516 = vmatprep.subr.mxu0 0.0
        %517 = vmatpush1.msra.mxu0 0.0
        %518 = vmatprep.subr.mxu0 0.0
        %519 = vmatpush1.msra.mxu0 0.0
        %520 = vmatprep.subr.mxu0 0.0
        %521 = vmatpush1.msra.mxu0 0.0
        %522 = vmatprep.subr.mxu0 0.0
        %523 = vmatpush1.msra.mxu0 0.0
        %524 = vmatprep.subr.mxu0 0.0
        %525 = vmatpush1.msra.mxu0 0.0
        %526 = vmatprep.subr.mxu0 0.0
        %527 = vmatpush1.msra.mxu0 0.0
        %528 = vmatprep.subr.mxu0 0.0
        %529 = vmatpush1.msra.mxu0 0.0
        %530 = vmatprep.subr.mxu0 0.0
        %531 = vmatpush1.msra.mxu0 0.0
        %532 = vmatprep.subr.mxu0 0.0
        %533 = vmatpush1.msra.mxu0 0.0
        %534 = vmatprep.subr.mxu0 0.0
        %535 = vmatpush1.msra.mxu0 0.0
        %536 = vmatprep.subr.mxu0 0.0
        %537 = vmatpush1.msra.mxu0 0.0
        %538 = vmatprep.subr.mxu0 0.0
        %539 = vmatpush1.msra.mxu0 0.0
        %540 = vmatprep.subr.mxu0 0.0
        %541 = vmatpush1.msra.mxu0 0.0
        %542 = vmatprep.subr.mxu0 0.0
        %543 = vmatpush1.msra.mxu0 0.0
        %544 = vmatprep.subr.mxu0 0.0
        %545 = vmatpush1.msra.mxu0 0.0
        %546 = vmatprep.subr.mxu0 0.0
        %547 = vmatpush1.msra.mxu0 0.0
        %548 = vmatprep.subr.mxu0 0.0
        %549 = vmatpush1.msra.mxu0 0.0
        %550 = vmatprep.subr.mxu0 0.0
        %551 = vmatpush1.msra.mxu0 0.0
        %552 = vmatprep.subr.mxu0 0.0
        %553 = vmatpush1.msra.mxu0 0.0
        %554 = vmatprep.subr.mxu0 0.0
        %555 = vmatpush1.msra.mxu0 0.0
        %556 = vmatprep.subr.mxu0 0.0
        %557 = vmatpush1.msra.mxu0 0.0
        %558 = vmatprep.mubr.f32.mxu0 0.0
        %559 = vmatmul.mubr.f32.gmra.mrb[0].mxu0 %v447
        %v560 = vpop.f32.mrb[0].mxu0
        %v561 = vadd.f32 %v443, %v560
        %v562 = vpop.f32.mrb[0].mxu0
        %563 = vmatprep.mubr.f32.mxu0 0.0
        %564 = vmatmul.mubr.f32.gmra.mrb[0].mxu0 %v450
        %v565 = vpop.f32.mrb[0].mxu0
        %v566 = vadd.f32 %v443, %v565
        %v567 = vpop.f32.mrb[0].mxu0
        %568 = vmatprep.mubr.f32.mxu0 0.0
        %569 = vmatmul.mubr.f32.gmra.mrb[0].mxu0 %v453
        %v570 = vpop.f32.mrb[0].mxu0
        %v571 = vadd.f32 %v443, %v570
        %v572 = vpop.f32.mrb[0].mxu0
        %573 = vmatprep.mubr.f32.mxu0 0.0
        %574 = vmatmul.mubr.f32.gmra.mrb[0].mxu0 %v456
        %v575 = vpop.f32.mrb[0].mxu0
        %v576 = vadd.f32 %v443, %v575
        %v577 = vpop.f32.mrb[0].mxu0
        %578 = vmatprep.mubr.f32.mxu0 0.0
        %579 = vmatmul.mubr.f32.gmra.mrb[0].mxu0 %v459
        %v580 = vpop.f32.mrb[0].mxu0
        %v581 = vadd.f32 %v443, %v580
        %v582 = vpop.f32.mrb[0].mxu0
        %583 = vmatprep.mubr.f32.mxu0 0.0
        %584 = vmatmul.mubr.f32.gmra.mrb[0].mxu0 %v462
        %v585 = vpop.f32.mrb[0].mxu0
        %v586 = vadd.f32 %v443, %v585
        %v587 = vpop.f32.mrb[0].mxu0
        %588 = vmatprep.mubr.f32.mxu0 0.0
        %589 = vmatmul.mubr.f32.gmra.mrb[0].mxu0 %v465
        %v590 = vpop.f32.mrb[0].mxu0
        %v591 = vadd.f32 %v443, %v590
        %v592 = vpop.f32.mrb[0].mxu0
        %593 = vmatprep.mubr.f32.mxu0 0.0
        %594 = vmatmul.mubr.f32.gmra.mrb[0].mxu0 %v468
        %v595 = vpop.f32.mrb[0].mxu0
        %v596 = vadd.f32 %v443, %v595
        %v597 = vpop.f32.mrb[0].mxu0
        %598 = vmatprep.mubr.f32.mxu0 0.0
        %599 = vmatmul.mubr.f32.gmra.mrb[0].mxu0 %v471
        %v600 = vpop.f32.mrb[0].mxu0
        %v601 = vadd.f32 %v443, %v600
        %v602 = vpop.f32.mrb[0].mxu0
        %603 = vmatprep.mubr.f32.mxu0 0.0
        %604 = vmatmul.mubr.f32.gmra.mrb[0].mxu0 %v474
        %v605 = vpop.f32.mrb[0].mxu0
        %v606 = vadd.f32 %v443, %v605
        %v607 = vpop.f32.mrb[0].mxu0
        %608 = vmatprep.mubr.f32.mxu0 0.0
        %609 = vmatmul.mubr.f32.gmra.mrb[0].mxu0 %v477
        %v610 = vpop.f32.mrb[0].mxu0
        %v611 = vadd.f32 %v443, %v610
        %v612 = vpop.f32.mrb[0].mxu0
        %613 = vmatprep.mubr.f32.mxu0 0.0
        %614 = vmatmul.mubr.f32.gmra.mrb[0].mxu0 %v480
        %v615 = vpop.f32.mrb[0].mxu0
        %v616 = vadd.f32 %v443, %v615
        %v617 = vpop.f32.mrb[0].mxu0
        %618 = vmatprep.mubr.f32.mxu0 0.0
        %619 = vmatmul.mubr.f32.gmra.mrb[0].mxu0 %v483
        %v620 = vpop.f32.mrb[0].mxu0
        %v621 = vadd.f32 %v443, %v620
        %v622 = vpop.f32.mrb[0].mxu0
        %623 = vmatprep.mubr.f32.mxu0 0.0
        %624 = vmatmul.mubr.f32.gmra.mrb[0].mxu0 %v486
        %v625 = vpop.f32.mrb[0].mxu0
        %v626 = vadd.f32 %v443, %v625
        %v627 = vpop.f32.mrb[0].mxu0
        %628 = vmatprep.mubr.f32.mxu0 0.0
        %629 = vmatmul.mubr.f32.gmra.mrb[0].mxu0 %v489
        %v630 = vpop.f32.mrb[0].mxu0
        %v631 = vadd.f32 %v443, %v630
        %v632 = vpop.f32.mrb[0].mxu0
        %633 = vmatprep.mubr.f32.mxu0 0.0
        %634 = vmatmul.mubr.f32.gmra.mrb[0].mxu0 %v492
        %v635 = vpop.f32.mrb[0].mxu0
        %v636 = vadd.f32 %v443, %v635
        %v637 = vpop.f32.mrb[0].mxu0
        %638 = vdwg.mxu0
        %v639 = vmax.f32 %v561, 0.0
        %v640 = vmax.f32 %v566, 0.0
        %v641 = vmax.f32 %v571, 0.0
        %v642 = vmax.f32 %v576, 0.0
        %v643 = vmax.f32 %v581, 0.0
        %v644 = vmax.f32 %v586, 0.0
        %v645 = vmax.f32 %v591, 0.0
        %v646 = vmax.f32 %v596, 0.0
        %v647 = vmax.f32 %v601, 0.0
        %v648 = vmax.f32 %v606, 0.0
        %v649 = vmax.f32 %v611, 0.0
        %v650 = vmax.f32 %v616, 0.0
        %v651 = vmax.f32 %v621, 0.0
        %v652 = vmax.f32 %v626, 0.0
        %v653 = vmax.f32 %v631, 0.0
        %v654 = vmax.f32 %v636, 0.0
        %v655 = vld [vmem:[%s3] sm:$0xff]
        %v656 = vld [vmem:[%s3 + $0x8] sm:$0xff]
        %v657 = vld [vmem:[%s3 + $0x10] sm:$0xff]
        %v658 = vld [vmem:[%s3 + $0x18] sm:$0xff]
        %v659 = vld [vmem:[%s3 + $0x20] sm:$0xff]
        %v660 = vld [vmem:[%s3 + $0x28] sm:$0xff]
        %v661 = vld [vmem:[%s3 + $0x30] sm:$0xff]
        %v662 = vld [vmem:[%s3 + $0x38] sm:$0xff]
        %v663 = vld [vmem:[%s3 + $0x40] sm:$0xff]
        %v664 = vld [vmem:[%s3 + $0x48] sm:$0xff]
        %v665 = vld [vmem:[%s3 + $0x50] sm:$0xff]
        %v666 = vld [vmem:[%s3 + $0x58] sm:$0xff]
        %v667 = vld [vmem:[%s3 + $0x60] sm:$0xff]
        %v668 = vld [vmem:[%s3 + $0x68] sm:$0xff]
        %v669 = vld [vmem:[%s3 + $0x70] sm:$0xff]
        %v670 = vld [vmem:[%s3 + $0x78] sm:$0xff]
        %v671 = vld [vmem:[%s4] sm:$0x1]
        %v673 = vlaneseq
        %v674 = vshrl.u32 %v673, 7
        %v675 = vsub.s32 0, %v674
        %v676 = vrot.slane %v671, %v675
        %678 = vmatprep.subr.mxu0 0.0
        %679 = vmatpush1.msra.mxu0 %v655
        %680 = vmatprep.subr.mxu0 0.0
        %681 = vmatpush1.msra.mxu0 %v656
        %682 = vmatprep.subr.mxu0 0.0
        %683 = vmatpush1.msra.mxu0 %v657
        %684 = vmatprep.subr.mxu0 0.0
        %685 = vmatpush1.msra.mxu0 %v658
        %686 = vmatprep.subr.mxu0 0.0
        %687 = vmatpush1.msra.mxu0 %v659
        %688 = vmatprep.subr.mxu0 0.0
        %689 = vmatpush1.msra.mxu0 %v660
        %690 = vmatprep.subr.mxu0 0.0
        %691 = vmatpush1.msra.mxu0 %v661
        %692 = vmatprep.subr.mxu0 0.0
        %693 = vmatpush1.msra.mxu0 %v662
        %694 = vmatprep.subr.mxu0 0.0
        %695 = vmatpush1.msra.mxu0 %v663
        %696 = vmatprep.subr.mxu0 0.0
        %697 = vmatpush1.msra.mxu0 %v664
        %698 = vmatprep.subr.mxu0 0.0
        %699 = vmatpush1.msra.mxu0 %v665
        %700 = vmatprep.subr.mxu0 0.0
        %701 = vmatpush1.msra.mxu0 %v666
        %702 = vmatprep.subr.mxu0 0.0
        %703 = vmatpush1.msra.mxu0 %v667
        %704 = vmatprep.subr.mxu0 0.0
        %705 = vmatpush1.msra.mxu0 %v668
        %706 = vmatprep.subr.mxu0 0.0
        %707 = vmatpush1.msra.mxu0 %v669
        %708 = vmatprep.subr.mxu0 0.0
        %709 = vmatpush1.msra.mxu0 %v670
        %710 = vmatprep.subr.mxu0 0.0
        %711 = vmatpush1.msra.mxu0 0.0
        %712 = vmatprep.subr.mxu0 0.0
        %713 = vmatpush1.msra.mxu0 0.0
        %714 = vmatprep.subr.mxu0 0.0
        %715 = vmatpush1.msra.mxu0 0.0
        %716 = vmatprep.subr.mxu0 0.0
        %717 = vmatpush1.msra.mxu0 0.0
        %718 = vmatprep.subr.mxu0 0.0
        %719 = vmatpush1.msra.mxu0 0.0
        %720 = vmatprep.subr.mxu0 0.0
        %721 = vmatpush1.msra.mxu0 0.0
        %722 = vmatprep.subr.mxu0 0.0
        %723 = vmatpush1.msra.mxu0 0.0
        %724 = vmatprep.subr.mxu0 0.0
        %725 = vmatpush1.msra.mxu0 0.0
        %726 = vmatprep.subr.mxu0 0.0
        %727 = vmatpush1.msra.mxu0 0.0
        %728 = vmatprep.subr.mxu0 0.0
        %729 = vmatpush1.msra.mxu0 0.0
        %730 = vmatprep.subr.mxu0 0.0
        %731 = vmatpush1.msra.mxu0 0.0
        %732 = vmatprep.subr.mxu0 0.0
        %733 = vmatpush1.msra.mxu0 0.0
        %734 = vmatprep.subr.mxu0 0.0
        %735 = vmatpush1.msra.mxu0 0.0
        %736 = vmatprep.subr.mxu0 0.0
        %737 = vmatpush1.msra.mxu0 0.0
        %738 = vmatprep.subr.mxu0 0.0
        %739 = vmatpush1.msra.mxu0 0.0
        %740 = vmatprep.subr.mxu0 0.0
        %741 = vmatpush1.msra.mxu0 0.0
        %742 = vmatprep.mubr.f32.mxu0 0.0
        %743 = vmatmul.mubr.f32.gmra.mrb[0].mxu0 %v639
        %v744 = vpop.f32.mrb[0].mxu0
        %v745 = vadd.f32 %v676, %v744
        %v746 = vpop.f32.mrb[0].mxu0
        %747 = vmatprep.mubr.f32.mxu0 0.0
        %748 = vmatmul.mubr.f32.gmra.mrb[0].mxu0 %v640
        %v749 = vpop.f32.mrb[0].mxu0
        %v750 = vadd.f32 %v676, %v749
        %v751 = vpop.f32.mrb[0].mxu0
        %752 = vmatprep.mubr.f32.mxu0 0.0
        %753 = vmatmul.mubr.f32.gmra.mrb[0].mxu0 %v641
        %v754 = vpop.f32.mrb[0].mxu0
        %v755 = vadd.f32 %v676, %v754
        %v756 = vpop.f32.mrb[0].mxu0
        %757 = vmatprep.mubr.f32.mxu0 0.0
        %758 = vmatmul.mubr.f32.gmra.mrb[0].mxu0 %v642
        %v759 = vpop.f32.mrb[0].mxu0
        %v760 = vadd.f32 %v676, %v759
        %v761 = vpop.f32.mrb[0].mxu0
        %762 = vmatprep.mubr.f32.mxu0 0.0
        %763 = vmatmul.mubr.f32.gmra.mrb[0].mxu0 %v643
        %v764 = vpop.f32.mrb[0].mxu0
        %v765 = vadd.f32 %v676, %v764
        %v766 = vpop.f32.mrb[0].mxu0
        %767 = vmatprep.mubr.f32.mxu0 0.0
        %768 = vmatmul.mubr.f32.gmra.mrb[0].mxu0 %v644
        %v769 = vpop.f32.mrb[0].mxu0
        %v770 = vadd.f32 %v676, %v769
        %v771 = vpop.f32.mrb[0].mxu0
        %772 = vmatprep.mubr.f32.mxu0 0.0
        %773 = vmatmul.mubr.f32.gmra.mrb[0].mxu0 %v645
        %v774 = vpop.f32.mrb[0].mxu0
        %v775 = vadd.f32 %v676, %v774
        %v776 = vpop.f32.mrb[0].mxu0
        %777 = vmatprep.mubr.f32.mxu0 0.0
        %778 = vmatmul.mubr.f32.gmra.mrb[0].mxu0 %v646
        %v779 = vpop.f32.mrb[0].mxu0
        %v780 = vadd.f32 %v676, %v779
        %v781 = vpop.f32.mrb[0].mxu0
        %782 = vmatprep.mubr.f32.mxu0 0.0
        %783 = vmatmul.mubr.f32.gmra.mrb[0].mxu0 %v647
        %v784 = vpop.f32.mrb[0].mxu0
        %v785 = vadd.f32 %v676, %v784
        %v786 = vpop.f32.mrb[0].mxu0
        %787 = vmatprep.mubr.f32.mxu0 0.0
        %788 = vmatmul.mubr.f32.gmra.mrb[0].mxu0 %v648
        %v789 = vpop.f32.mrb[0].mxu0
        %v790 = vadd.f32 %v676, %v789
        %v791 = vpop.f32.mrb[0].mxu0
        %792 = vmatprep.mubr.f32.mxu0 0.0
        %793 = vmatmul.mubr.f32.gmra.mrb[0].mxu0 %v649
        %v794 = vpop.f32.mrb[0].mxu0
        %v795 = vadd.f32 %v676, %v794
        %v796 = vpop.f32.mrb[0].mxu0
        %797 = vmatprep.mubr.f32.mxu0 0.0
        %798 = vmatmul.mubr.f32.gmra.mrb[0].mxu0 %v650
        %v799 = vpop.f32.mrb[0].mxu0
        %v800 = vadd.f32 %v676, %v799
        %v801 = vpop.f32.mrb[0].mxu0
        %802 = vmatprep.mubr.f32.mxu0 0.0
        %803 = vmatmul.mubr.f32.gmra.mrb[0].mxu0 %v651
        %v804 = vpop.f32.mrb[0].mxu0
        %v805 = vadd.f32 %v676, %v804
        %v806 = vpop.f32.mrb[0].mxu0
        %807 = vmatprep.mubr.f32.mxu0 0.0
        %808 = vmatmul.mubr.f32.gmra.mrb[0].mxu0 %v652
        %v809 = vpop.f32.mrb[0].mxu0
        %v810 = vadd.f32 %v676, %v809
        %v811 = vpop.f32.mrb[0].mxu0
        %812 = vmatprep.mubr.f32.mxu0 0.0
        %813 = vmatmul.mubr.f32.gmra.mrb[0].mxu0 %v653
        %v814 = vpop.f32.mrb[0].mxu0
        %v815 = vadd.f32 %v676, %v814
        %v816 = vpop.f32.mrb[0].mxu0
        %817 = vmatprep.mubr.f32.mxu0 0.0
        %818 = vmatmul.mubr.f32.gmra.mrb[0].mxu0 %v654
        %v819 = vpop.f32.mrb[0].mxu0
        %v820 = vadd.f32 %v676, %v819
        %v821 = vpop.f32.mrb[0].mxu0
        %822 = vdwg.mxu0
        %v823 = vmax.f32 %v745, 0.0
        %v824 = vmax.f32 %v750, 0.0
        %v825 = vmax.f32 %v755, 0.0
        %v826 = vmax.f32 %v760, 0.0
        %v827 = vmax.f32 %v765, 0.0
        %v828 = vmax.f32 %v770, 0.0
        %v829 = vmax.f32 %v775, 0.0
        %v830 = vmax.f32 %v780, 0.0
        %v831 = vmax.f32 %v785, 0.0
        %v832 = vmax.f32 %v790, 0.0
        %v833 = vmax.f32 %v795, 0.0
        %v834 = vmax.f32 %v800, 0.0
        %v835 = vmax.f32 %v805, 0.0
        %v836 = vmax.f32 %v810, 0.0
        %v837 = vmax.f32 %v815, 0.0
        %v838 = vmax.f32 %v820, 0.0
        %v839 = vld [vmem:[%s5] sm:$0xff]
        %v840 = vld [vmem:[%s5 + $0x8] sm:$0xff]
        %v841 = vld [vmem:[%s5 + $0x10] sm:$0xff]
        %v842 = vld [vmem:[%s5 + $0x18] sm:$0xff]
        %v843 = vld [vmem:[%s5 + $0x20] sm:$0xff]
        %v844 = vld [vmem:[%s5 + $0x28] sm:$0xff]
        %v845 = vld [vmem:[%s5 + $0x30] sm:$0xff]
        %v846 = vld [vmem:[%s5 + $0x38] sm:$0xff]
        %v847 = vld [vmem:[%s5 + $0x40] sm:$0xff]
        %v848 = vld [vmem:[%s5 + $0x48] sm:$0xff]
        %v849 = vld [vmem:[%s5 + $0x50] sm:$0xff]
        %v850 = vld [vmem:[%s5 + $0x58] sm:$0xff]
        %v851 = vld [vmem:[%s5 + $0x60] sm:$0xff]
        %v852 = vld [vmem:[%s5 + $0x68] sm:$0xff]
        %v853 = vld [vmem:[%s5 + $0x70] sm:$0xff]
        %v854 = vld [vmem:[%s5 + $0x78] sm:$0xff]
        %v855 = vld [vmem:[%s6] sm:$0x1]
        %v857 = vlaneseq
        %v858 = vshrl.u32 %v857, 7
        %v859 = vsub.s32 0, %v858
        %v860 = vrot.slane %v855, %v859
        %862 = vmatprep.subr.mxu0 0.0
        %863 = vmatpush1.msra.mxu0 %v839
        %864 = vmatprep.subr.mxu0 0.0
        %865 = vmatpush1.msra.mxu0 %v840
        %866 = vmatprep.subr.mxu0 0.0
        %867 = vmatpush1.msra.mxu0 %v841
        %868 = vmatprep.subr.mxu0 0.0
        %869 = vmatpush1.msra.mxu0 %v842
        %870 = vmatprep.subr.mxu0 0.0
        %871 = vmatpush1.msra.mxu0 %v843
        %872 = vmatprep.subr.mxu0 0.0
        %873 = vmatpush1.msra.mxu0 %v844
        %874 = vmatprep.subr.mxu0 0.0
        %875 = vmatpush1.msra.mxu0 %v845
        %876 = vmatprep.subr.mxu0 0.0
        %877 = vmatpush1.msra.mxu0 %v846
        %878 = vmatprep.subr.mxu0 0.0
        %879 = vmatpush1.msra.mxu0 %v847
        %880 = vmatprep.subr.mxu0 0.0
        %881 = vmatpush1.msra.mxu0 %v848
        %882 = vmatprep.subr.mxu0 0.0
        %883 = vmatpush1.msra.mxu0 %v849
        %884 = vmatprep.subr.mxu0 0.0
        %885 = vmatpush1.msra.mxu0 %v850
        %886 = vmatprep.subr.mxu0 0.0
        %887 = vmatpush1.msra.mxu0 %v851
        %888 = vmatprep.subr.mxu0 0.0
        %889 = vmatpush1.msra.mxu0 %v852
        %890 = vmatprep.subr.mxu0 0.0
        %891 = vmatpush1.msra.mxu0 %v853
        %892 = vmatprep.subr.mxu0 0.0
        %893 = vmatpush1.msra.mxu0 %v854
        %894 = vmatprep.subr.mxu0 0.0
        %895 = vmatpush1.msra.mxu0 0.0
        %896 = vmatprep.subr.mxu0 0.0
        %897 = vmatpush1.msra.mxu0 0.0
        %898 = vmatprep.subr.mxu0 0.0
        %899 = vmatpush1.msra.mxu0 0.0
        %900 = vmatprep.subr.mxu0 0.0
        %901 = vmatpush1.msra.mxu0 0.0
        %902 = vmatprep.subr.mxu0 0.0
        %903 = vmatpush1.msra.mxu0 0.0
        %904 = vmatprep.subr.mxu0 0.0
        %905 = vmatpush1.msra.mxu0 0.0
        %906 = vmatprep.subr.mxu0 0.0
        %907 = vmatpush1.msra.mxu0 0.0
        %908 = vmatprep.subr.mxu0 0.0
        %909 = vmatpush1.msra.mxu0 0.0
        %910 = vmatprep.subr.mxu0 0.0
        %911 = vmatpush1.msra.mxu0 0.0
        %912 = vmatprep.subr.mxu0 0.0
        %913 = vmatpush1.msra.mxu0 0.0
        %914 = vmatprep.subr.mxu0 0.0
        %915 = vmatpush1.msra.mxu0 0.0
        %916 = vmatprep.subr.mxu0 0.0
        %917 = vmatpush1.msra.mxu0 0.0
        %918 = vmatprep.subr.mxu0 0.0
        %919 = vmatpush1.msra.mxu0 0.0
        %920 = vmatprep.subr.mxu0 0.0
        %921 = vmatpush1.msra.mxu0 0.0
        %922 = vmatprep.subr.mxu0 0.0
        %923 = vmatpush1.msra.mxu0 0.0
        %924 = vmatprep.subr.mxu0 0.0
        %925 = vmatpush1.msra.mxu0 0.0
        %926 = vmatprep.mubr.f32.mxu0 0.0
        %927 = vmatmul.mubr.f32.gmra.mrb[0].mxu0 %v823
        %v928 = vpop.f32.mrb[0].mxu0
        %v929 = vadd.f32 %v860, %v928
        %v930 = vpop.f32.mrb[0].mxu0
        %931 = vmatprep.mubr.f32.mxu0 0.0
        %932 = vmatmul.mubr.f32.gmra.mrb[0].mxu0 %v824
        %v933 = vpop.f32.mrb[0].mxu0
        %v934 = vadd.f32 %v860, %v933
        %v935 = vpop.f32.mrb[0].mxu0
        %936 = vmatprep.mubr.f32.mxu0 0.0
        %937 = vmatmul.mubr.f32.gmra.mrb[0].mxu0 %v825
        %v938 = vpop.f32.mrb[0].mxu0
        %v939 = vadd.f32 %v860, %v938
        %v940 = vpop.f32.mrb[0].mxu0
        %941 = vmatprep.mubr.f32.mxu0 0.0
        %942 = vmatmul.mubr.f32.gmra.mrb[0].mxu0 %v826
        %v943 = vpop.f32.mrb[0].mxu0
        %v944 = vadd.f32 %v860, %v943
        %v945 = vpop.f32.mrb[0].mxu0
        %946 = vmatprep.mubr.f32.mxu0 0.0
        %947 = vmatmul.mubr.f32.gmra.mrb[0].mxu0 %v827
        %v948 = vpop.f32.mrb[0].mxu0
        %v949 = vadd.f32 %v860, %v948
        %v950 = vpop.f32.mrb[0].mxu0
        %951 = vmatprep.mubr.f32.mxu0 0.0
        %952 = vmatmul.mubr.f32.gmra.mrb[0].mxu0 %v828
        %v953 = vpop.f32.mrb[0].mxu0
        %v954 = vadd.f32 %v860, %v953
        %v955 = vpop.f32.mrb[0].mxu0
        %956 = vmatprep.mubr.f32.mxu0 0.0
        %957 = vmatmul.mubr.f32.gmra.mrb[0].mxu0 %v829
        %v958 = vpop.f32.mrb[0].mxu0
        %v959 = vadd.f32 %v860, %v958
        %v960 = vpop.f32.mrb[0].mxu0
        %961 = vmatprep.mubr.f32.mxu0 0.0
        %962 = vmatmul.mubr.f32.gmra.mrb[0].mxu0 %v830
        %v963 = vpop.f32.mrb[0].mxu0
        %v964 = vadd.f32 %v860, %v963
        %v965 = vpop.f32.mrb[0].mxu0
        %966 = vmatprep.mubr.f32.mxu0 0.0
        %967 = vmatmul.mubr.f32.gmra.mrb[0].mxu0 %v831
        %v968 = vpop.f32.mrb[0].mxu0
        %v969 = vadd.f32 %v860, %v968
        %v970 = vpop.f32.mrb[0].mxu0
        %971 = vmatprep.mubr.f32.mxu0 0.0
        %972 = vmatmul.mubr.f32.gmra.mrb[0].mxu0 %v832
        %v973 = vpop.f32.mrb[0].mxu0
        %v974 = vadd.f32 %v860, %v973
        %v975 = vpop.f32.mrb[0].mxu0
        %976 = vmatprep.mubr.f32.mxu0 0.0
        %977 = vmatmul.mubr.f32.gmra.mrb[0].mxu0 %v833
        %v978 = vpop.f32.mrb[0].mxu0
        %v979 = vadd.f32 %v860, %v978
        %v980 = vpop.f32.mrb[0].mxu0
        %981 = vmatprep.mubr.f32.mxu0 0.0
        %982 = vmatmul.mubr.f32.gmra.mrb[0].mxu0 %v834
        %v983 = vpop.f32.mrb[0].mxu0
        %v984 = vadd.f32 %v860, %v983
        %v985 = vpop.f32.mrb[0].mxu0
        %986 = vmatprep.mubr.f32.mxu0 0.0
        %987 = vmatmul.mubr.f32.gmra.mrb[0].mxu0 %v835
        %v988 = vpop.f32.mrb[0].mxu0
        %v989 = vadd.f32 %v860, %v988
        %v990 = vpop.f32.mrb[0].mxu0
        %991 = vmatprep.mubr.f32.mxu0 0.0
        %992 = vmatmul.mubr.f32.gmra.mrb[0].mxu0 %v836
        %v993 = vpop.f32.mrb[0].mxu0
        %v994 = vadd.f32 %v860, %v993
        %v995 = vpop.f32.mrb[0].mxu0
        %996 = vmatprep.mubr.f32.mxu0 0.0
        %997 = vmatmul.mubr.f32.gmra.mrb[0].mxu0 %v837
        %v998 = vpop.f32.mrb[0].mxu0
        %v999 = vadd.f32 %v860, %v998
        %v1000 = vpop.f32.mrb[0].mxu0
        %1001 = vmatprep.mubr.f32.mxu0 0.0
        %1002 = vmatmul.mubr.f32.gmra.mrb[0].mxu0 %v838
        %v1003 = vpop.f32.mrb[0].mxu0
        %v1004 = vadd.f32 %v860, %v1003
        %v1005 = vpop.f32.mrb[0].mxu0
        %1006 = vdwg.mxu0
        %v1007 = vmax.f32 %v929, 0.0
        %v1008 = vmax.f32 %v934, 0.0
        %v1009 = vmax.f32 %v939, 0.0
        %v1010 = vmax.f32 %v944, 0.0
        %v1011 = vmax.f32 %v949, 0.0
        %v1012 = vmax.f32 %v954, 0.0
        %v1013 = vmax.f32 %v959, 0.0
        %v1014 = vmax.f32 %v964, 0.0
        %v1015 = vmax.f32 %v969, 0.0
        %v1016 = vmax.f32 %v974, 0.0
        %v1017 = vmax.f32 %v979, 0.0
        %v1018 = vmax.f32 %v984, 0.0
        %v1019 = vmax.f32 %v989, 0.0
        %v1020 = vmax.f32 %v994, 0.0
        %v1021 = vmax.f32 %v999, 0.0
        %v1022 = vmax.f32 %v1004, 0.0
        %v1023 = vld [vmem:[#allocation2] sm:$0xff]
        %v1024 = vld [vmem:[#allocation2 + $0x8] sm:$0xff]
        %v1025 = vld [vmem:[#allocation2 + $0x10] sm:$0xff]
        %v1026 = vld [vmem:[#allocation2 + $0x18] sm:$0xff]
        %v1027 = vld [vmem:[#allocation2 + $0x20] sm:$0xff]
        %v1028 = vld [vmem:[#allocation2 + $0x28] sm:$0xff]
        %v1029 = vld [vmem:[#allocation2 + $0x30] sm:$0xff]
        %v1030 = vld [vmem:[#allocation2 + $0x38] sm:$0xff]
        %v1031 = vld [vmem:[#allocation2 + $0x40] sm:$0xff]
        %v1032 = vld [vmem:[#allocation2 + $0x48] sm:$0xff]
        %v1033 = vld [vmem:[#allocation2 + $0x50] sm:$0xff]
        %v1034 = vld [vmem:[#allocation2 + $0x58] sm:$0xff]
        %v1035 = vld [vmem:[#allocation2 + $0x60] sm:$0xff]
        %v1036 = vld [vmem:[#allocation2 + $0x68] sm:$0xff]
        %v1037 = vld [vmem:[#allocation2 + $0x70] sm:$0xff]
        %v1038 = vld [vmem:[#allocation2 + $0x78] sm:$0xff]
        %v1039 = vld [vmem:[%s8] sm:$0x1]
        %v1041 = vlaneseq
        %v1042 = vshrl.u32 %v1041, 7
        %v1043 = vsub.s32 0, %v1042
        %v1044 = vrot.slane %v1039, %v1043
        %1046 = vmatprep.subr.mxu0 0.0
        %1047 = vmatpush1.msra.mxu0 %v1023
        %1048 = vmatprep.subr.mxu0 0.0
        %1049 = vmatpush1.msra.mxu0 %v1024
        %1050 = vmatprep.subr.mxu0 0.0
        %1051 = vmatpush1.msra.mxu0 %v1025
        %1052 = vmatprep.subr.mxu0 0.0
        %1053 = vmatpush1.msra.mxu0 %v1026
        %1054 = vmatprep.subr.mxu0 0.0
        %1055 = vmatpush1.msra.mxu0 %v1027
        %1056 = vmatprep.subr.mxu0 0.0
        %1057 = vmatpush1.msra.mxu0 %v1028
        %1058 = vmatprep.subr.mxu0 0.0
        %1059 = vmatpush1.msra.mxu0 %v1029
        %1060 = vmatprep.subr.mxu0 0.0
        %1061 = vmatpush1.msra.mxu0 %v1030
        %1062 = vmatprep.subr.mxu0 0.0
        %1063 = vmatpush1.msra.mxu0 %v1031
        %1064 = vmatprep.subr.mxu0 0.0
        %1065 = vmatpush1.msra.mxu0 %v1032
        %1066 = vmatprep.subr.mxu0 0.0
        %1067 = vmatpush1.msra.mxu0 %v1033
        %1068 = vmatprep.subr.mxu0 0.0
        %1069 = vmatpush1.msra.mxu0 %v1034
        %1070 = vmatprep.subr.mxu0 0.0
        %1071 = vmatpush1.msra.mxu0 %v1035
        %1072 = vmatprep.subr.mxu0 0.0
        %1073 = vmatpush1.msra.mxu0 %v1036
        %1074 = vmatprep.subr.mxu0 0.0
        %1075 = vmatpush1.msra.mxu0 %v1037
        %1076 = vmatprep.subr.mxu0 0.0
        %1077 = vmatpush1.msra.mxu0 %v1038
        %1078 = vmatprep.subr.mxu0 0.0
        %1079 = vmatpush1.msra.mxu0 0.0
        %1080 = vmatprep.subr.mxu0 0.0
        %1081 = vmatpush1.msra.mxu0 0.0
        %1082 = vmatprep.subr.mxu0 0.0
        %1083 = vmatpush1.msra.mxu0 0.0
        %1084 = vmatprep.subr.mxu0 0.0
        %1085 = vmatpush1.msra.mxu0 0.0
        %1086 = vmatprep.subr.mxu0 0.0
        %1087 = vmatpush1.msra.mxu0 0.0
        %1088 = vmatprep.subr.mxu0 0.0
        %1089 = vmatpush1.msra.mxu0 0.0
        %1090 = vmatprep.subr.mxu0 0.0
        %1091 = vmatpush1.msra.mxu0 0.0
        %1092 = vmatprep.subr.mxu0 0.0
        %1093 = vmatpush1.msra.mxu0 0.0
        %1094 = vmatprep.subr.mxu0 0.0
        %1095 = vmatpush1.msra.mxu0 0.0
        %1096 = vmatprep.subr.mxu0 0.0
        %1097 = vmatpush1.msra.mxu0 0.0
        %1098 = vmatprep.subr.mxu0 0.0
        %1099 = vmatpush1.msra.mxu0 0.0
        %1100 = vmatprep.subr.mxu0 0.0
        %1101 = vmatpush1.msra.mxu0 0.0
        %1102 = vmatprep.subr.mxu0 0.0
        %1103 = vmatpush1.msra.mxu0 0.0
        %1104 = vmatprep.subr.mxu0 0.0
        %1105 = vmatpush1.msra.mxu0 0.0
        %1106 = vmatprep.subr.mxu0 0.0
        %1107 = vmatpush1.msra.mxu0 0.0
        %1108 = vmatprep.subr.mxu0 0.0
        %1109 = vmatpush1.msra.mxu0 0.0
        %1110 = vmatprep.mubr.f32.mxu0 0.0
        %1111 = vmatmul.mubr.f32.gmra.mrb[0].mxu0 %v1007
        %v1112 = vpop.f32.mrb[0].mxu0
        %v1113 = vadd.f32 %v1044, %v1112
        %v1114 = vpop.f32.mrb[0].mxu0
        %1115 = vmatprep.mubr.f32.mxu0 0.0
        %1116 = vmatmul.mubr.f32.gmra.mrb[0].mxu0 %v1008
        %v1117 = vpop.f32.mrb[0].mxu0
        %v1118 = vadd.f32 %v1044, %v1117
        %v1119 = vpop.f32.mrb[0].mxu0
        %1120 = vmatprep.mubr.f32.mxu0 0.0
        %1121 = vmatmul.mubr.f32.gmra.mrb[0].mxu0 %v1009
        %v1122 = vpop.f32.mrb[0].mxu0
        %v1123 = vadd.f32 %v1044, %v1122
        %v1124 = vpop.f32.mrb[0].mxu0
        %1125 = vmatprep.mubr.f32.mxu0 0.0
        %1126 = vmatmul.mubr.f32.gmra.mrb[0].mxu0 %v1010
        %v1127 = vpop.f32.mrb[0].mxu0
        %v1128 = vadd.f32 %v1044, %v1127
        %v1129 = vpop.f32.mrb[0].mxu0
        %1130 = vmatprep.mubr.f32.mxu0 0.0
        %1131 = vmatmul.mubr.f32.gmra.mrb[0].mxu0 %v1011
        %v1132 = vpop.f32.mrb[0].mxu0
        %v1133 = vadd.f32 %v1044, %v1132
        %v1134 = vpop.f32.mrb[0].mxu0
        %1135 = vmatprep.mubr.f32.mxu0 0.0
        %1136 = vmatmul.mubr.f32.gmra.mrb[0].mxu0 %v1012
        %v1137 = vpop.f32.mrb[0].mxu0
        %v1138 = vadd.f32 %v1044, %v1137
        %v1139 = vpop.f32.mrb[0].mxu0
        %1140 = vmatprep.mubr.f32.mxu0 0.0
        %1141 = vmatmul.mubr.f32.gmra.mrb[0].mxu0 %v1013
        %v1142 = vpop.f32.mrb[0].mxu0
        %v1143 = vadd.f32 %v1044, %v1142
        %v1144 = vpop.f32.mrb[0].mxu0
        %1145 = vmatprep.mubr.f32.mxu0 0.0
        %1146 = vmatmul.mubr.f32.gmra.mrb[0].mxu0 %v1014
        %v1147 = vpop.f32.mrb[0].mxu0
        %v1148 = vadd.f32 %v1044, %v1147
        %v1149 = vpop.f32.mrb[0].mxu0
        %1150 = vmatprep.mubr.f32.mxu0 0.0
        %1151 = vmatmul.mubr.f32.gmra.mrb[0].mxu0 %v1015
        %v1152 = vpop.f32.mrb[0].mxu0
        %v1153 = vadd.f32 %v1044, %v1152
        %v1154 = vpop.f32.mrb[0].mxu0
        %1155 = vmatprep.mubr.f32.mxu0 0.0
        %1156 = vmatmul.mubr.f32.gmra.mrb[0].mxu0 %v1016
        %v1157 = vpop.f32.mrb[0].mxu0
        %v1158 = vadd.f32 %v1044, %v1157
        %v1159 = vpop.f32.mrb[0].mxu0
        %1160 = vmatprep.mubr.f32.mxu0 0.0
        %1161 = vmatmul.mubr.f32.gmra.mrb[0].mxu0 %v1017
        %v1162 = vpop.f32.mrb[0].mxu0
        %v1163 = vadd.f32 %v1044, %v1162
        %v1164 = vpop.f32.mrb[0].mxu0
        %1165 = vmatprep.mubr.f32.mxu0 0.0
        %1166 = vmatmul.mubr.f32.gmra.mrb[0].mxu0 %v1018
        %v1167 = vpop.f32.mrb[0].mxu0
        %v1168 = vadd.f32 %v1044, %v1167
        %v1169 = vpop.f32.mrb[0].mxu0
        %1170 = vmatprep.mubr.f32.mxu0 0.0
        %1171 = vmatmul.mubr.f32.gmra.mrb[0].mxu0 %v1019
        %v1172 = vpop.f32.mrb[0].mxu0
        %v1173 = vadd.f32 %v1044, %v1172
        %v1174 = vpop.f32.mrb[0].mxu0
        %1175 = vmatprep.mubr.f32.mxu0 0.0
        %1176 = vmatmul.mubr.f32.gmra.mrb[0].mxu0 %v1020
        %v1177 = vpop.f32.mrb[0].mxu0
        %v1178 = vadd.f32 %v1044, %v1177
        %v1179 = vpop.f32.mrb[0].mxu0
        %1180 = vmatprep.mubr.f32.mxu0 0.0
        %1181 = vmatmul.mubr.f32.gmra.mrb[0].mxu0 %v1021
        %v1182 = vpop.f32.mrb[0].mxu0
        %v1183 = vadd.f32 %v1044, %v1182
        %v1184 = vpop.f32.mrb[0].mxu0
        %1185 = vmatprep.mubr.f32.mxu0 0.0
        %1186 = vmatmul.mubr.f32.gmra.mrb[0].mxu0 %v1022
        %v1187 = vpop.f32.mrb[0].mxu0
        %v1188 = vadd.f32 %v1044, %v1187
        %v1189 = vpop.f32.mrb[0].mxu0
        %1190 = vdwg.mxu0
        %v1191 = vmax.f32 %v1113, 0.0
        %v1192 = vmax.f32 %v1118, 0.0
        %v1193 = vmax.f32 %v1123, 0.0
        %v1194 = vmax.f32 %v1128, 0.0
        %v1195 = vmax.f32 %v1133, 0.0
        %v1196 = vmax.f32 %v1138, 0.0
        %v1197 = vmax.f32 %v1143, 0.0
        %v1198 = vmax.f32 %v1148, 0.0
        %v1199 = vmax.f32 %v1153, 0.0
        %v1200 = vmax.f32 %v1158, 0.0
        %v1201 = vmax.f32 %v1163, 0.0
        %v1202 = vmax.f32 %v1168, 0.0
        %v1203 = vmax.f32 %v1173, 0.0
        %v1204 = vmax.f32 %v1178, 0.0
        %v1205 = vmax.f32 %v1183, 0.0
        %v1206 = vmax.f32 %v1188, 0.0
        %v1207 = vld [vmem:[#allocation5] sm:$0xff]
        %v1208 = vld [vmem:[#allocation5 + $0x8] sm:$0xff]
        %v1209 = vld [vmem:[#allocation5 + $0x10] sm:$0xff]
        %v1210 = vld [vmem:[#allocation5 + $0x18] sm:$0xff]
        %v1211 = vld [vmem:[#allocation5 + $0x20] sm:$0xff]
        %v1212 = vld [vmem:[#allocation5 + $0x28] sm:$0xff]
        %v1213 = vld [vmem:[#allocation5 + $0x30] sm:$0xff]
        %v1214 = vld [vmem:[#allocation5 + $0x38] sm:$0xff]
        %v1215 = vld [vmem:[#allocation5 + $0x40] sm:$0xff]
        %v1216 = vld [vmem:[#allocation5 + $0x48] sm:$0xff]
        %v1217 = vld [vmem:[#allocation5 + $0x50] sm:$0xff]
        %v1218 = vld [vmem:[#allocation5 + $0x58] sm:$0xff]
        %v1219 = vld [vmem:[#allocation5 + $0x60] sm:$0xff]
        %v1220 = vld [vmem:[#allocation5 + $0x68] sm:$0xff]
        %v1221 = vld [vmem:[#allocation5 + $0x70] sm:$0xff]
        %v1222 = vld [vmem:[#allocation5 + $0x78] sm:$0xff]
        %v1223 = vld [vmem:[%s10] sm:$0x1]
        %v1225 = vlaneseq
        %v1226 = vshrl.u32 %v1225, 7
        %v1227 = vsub.s32 0, %v1226
        %v1228 = vrot.slane %v1223, %v1227
        %1230 = vmatprep.subr.mxu0 0.0
        %1231 = vmatpush1.msra.mxu0 %v1207
        %1232 = vmatprep.subr.mxu0 0.0
        %1233 = vmatpush1.msra.mxu0 %v1208
        %1234 = vmatprep.subr.mxu0 0.0
        %1235 = vmatpush1.msra.mxu0 %v1209
        %1236 = vmatprep.subr.mxu0 0.0
        %1237 = vmatpush1.msra.mxu0 %v1210
        %1238 = vmatprep.subr.mxu0 0.0
        %1239 = vmatpush1.msra.mxu0 %v1211
        %1240 = vmatprep.subr.mxu0 0.0
        %1241 = vmatpush1.msra.mxu0 %v1212
        %1242 = vmatprep.subr.mxu0 0.0
        %1243 = vmatpush1.msra.mxu0 %v1213
        %1244 = vmatprep.subr.mxu0 0.0
        %1245 = vmatpush1.msra.mxu0 %v1214
        %1246 = vmatprep.subr.mxu0 0.0
        %1247 = vmatpush1.msra.mxu0 %v1215
        %1248 = vmatprep.subr.mxu0 0.0
        %1249 = vmatpush1.msra.mxu0 %v1216
        %1250 = vmatprep.subr.mxu0 0.0
        %1251 = vmatpush1.msra.mxu0 %v1217
        %1252 = vmatprep.subr.mxu0 0.0
        %1253 = vmatpush1.msra.mxu0 %v1218
        %1254 = vmatprep.subr.mxu0 0.0
        %1255 = vmatpush1.msra.mxu0 %v1219
        %1256 = vmatprep.subr.mxu0 0.0
        %1257 = vmatpush1.msra.mxu0 %v1220
        %1258 = vmatprep.subr.mxu0 0.0
        %1259 = vmatpush1.msra.mxu0 %v1221
        %1260 = vmatprep.subr.mxu0 0.0
        %1261 = vmatpush1.msra.mxu0 %v1222
        %1262 = vmatprep.subr.mxu0 0.0
        %1263 = vmatpush1.msra.mxu0 0.0
        %1264 = vmatprep.subr.mxu0 0.0
        %1265 = vmatpush1.msra.mxu0 0.0
        %1266 = vmatprep.subr.mxu0 0.0
        %1267 = vmatpush1.msra.mxu0 0.0
        %1268 = vmatprep.subr.mxu0 0.0
        %1269 = vmatpush1.msra.mxu0 0.0
        %1270 = vmatprep.subr.mxu0 0.0
        %1271 = vmatpush1.msra.mxu0 0.0
        %1272 = vmatprep.subr.mxu0 0.0
        %1273 = vmatpush1.msra.mxu0 0.0
        %1274 = vmatprep.subr.mxu0 0.0
        %1275 = vmatpush1.msra.mxu0 0.0
        %1276 = vmatprep.subr.mxu0 0.0
        %1277 = vmatpush1.msra.mxu0 0.0
        %1278 = vmatprep.subr.mxu0 0.0
        %1279 = vmatpush1.msra.mxu0 0.0
        %1280 = vmatprep.subr.mxu0 0.0
        %1281 = vmatpush1.msra.mxu0 0.0
        %1282 = vmatprep.subr.mxu0 0.0
        %1283 = vmatpush1.msra.mxu0 0.0
        %1284 = vmatprep.subr.mxu0 0.0
        %1285 = vmatpush1.msra.mxu0 0.0
        %1286 = vmatprep.subr.mxu0 0.0
        %1287 = vmatpush1.msra.mxu0 0.0
        %1288 = vmatprep.subr.mxu0 0.0
        %1289 = vmatpush1.msra.mxu0 0.0
        %1290 = vmatprep.subr.mxu0 0.0
        %1291 = vmatpush1.msra.mxu0 0.0
        %1292 = vmatprep.subr.mxu0 0.0
        %1293 = vmatpush1.msra.mxu0 0.0
        %1294 = vmatprep.mubr.f32.mxu0 0.0
        %1295 = vmatmul.mubr.f32.gmra.mrb[0].mxu0 %v1191
        %v1296 = vpop.f32.mrb[0].mxu0
        %v1297 = vadd.f32 %v1228, %v1296
        %v1298 = vpop.f32.mrb[0].mxu0
        %1299 = vmatprep.mubr.f32.mxu0 0.0
        %1300 = vmatmul.mubr.f32.gmra.mrb[0].mxu0 %v1192
        %v1301 = vpop.f32.mrb[0].mxu0
        %v1302 = vadd.f32 %v1228, %v1301
        %v1303 = vpop.f32.mrb[0].mxu0
        %1304 = vmatprep.mubr.f32.mxu0 0.0
        %1305 = vmatmul.mubr.f32.gmra.mrb[0].mxu0 %v1193
        %v1306 = vpop.f32.mrb[0].mxu0
        %v1307 = vadd.f32 %v1228, %v1306
        %v1308 = vpop.f32.mrb[0].mxu0
        %1309 = vmatprep.mubr.f32.mxu0 0.0
        %1310 = vmatmul.mubr.f32.gmra.mrb[0].mxu0 %v1194
        %v1311 = vpop.f32.mrb[0].mxu0
        %v1312 = vadd.f32 %v1228, %v1311
        %v1313 = vpop.f32.mrb[0].mxu0
        %1314 = vmatprep.mubr.f32.mxu0 0.0
        %1315 = vmatmul.mubr.f32.gmra.mrb[0].mxu0 %v1195
        %v1316 = vpop.f32.mrb[0].mxu0
        %v1317 = vadd.f32 %v1228, %v1316
        %v1318 = vpop.f32.mrb[0].mxu0
        %1319 = vmatprep.mubr.f32.mxu0 0.0
        %1320 = vmatmul.mubr.f32.gmra.mrb[0].mxu0 %v1196
        %v1321 = vpop.f32.mrb[0].mxu0
        %v1322 = vadd.f32 %v1228, %v1321
        %v1323 = vpop.f32.mrb[0].mxu0
        %1324 = vmatprep.mubr.f32.mxu0 0.0
        %1325 = vmatmul.mubr.f32.gmra.mrb[0].mxu0 %v1197
        %v1326 = vpop.f32.mrb[0].mxu0
        %v1327 = vadd.f32 %v1228, %v1326
        %v1328 = vpop.f32.mrb[0].mxu0
        %1329 = vmatprep.mubr.f32.mxu0 0.0
        %1330 = vmatmul.mubr.f32.gmra.mrb[0].mxu0 %v1198
        %v1331 = vpop.f32.mrb[0].mxu0
        %v1332 = vadd.f32 %v1228, %v1331
        %v1333 = vpop.f32.mrb[0].mxu0
        %1334 = vmatprep.mubr.f32.mxu0 0.0
        %1335 = vmatmul.mubr.f32.gmra.mrb[0].mxu0 %v1199
        %v1336 = vpop.f32.mrb[0].mxu0
        %v1337 = vadd.f32 %v1228, %v1336
        %v1338 = vpop.f32.mrb[0].mxu0
        %1339 = vmatprep.mubr.f32.mxu0 0.0
        %1340 = vmatmul.mubr.f32.gmra.mrb[0].mxu0 %v1200
        %v1341 = vpop.f32.mrb[0].mxu0
        %v1342 = vadd.f32 %v1228, %v1341
        %v1343 = vpop.f32.mrb[0].mxu0
        %1344 = vmatprep.mubr.f32.mxu0 0.0
        %1345 = vmatmul.mubr.f32.gmra.mrb[0].mxu0 %v1201
        %v1346 = vpop.f32.mrb[0].mxu0
        %v1347 = vadd.f32 %v1228, %v1346
        %v1348 = vpop.f32.mrb[0].mxu0
        %1349 = vmatprep.mubr.f32.mxu0 0.0
        %1350 = vmatmul.mubr.f32.gmra.mrb[0].mxu0 %v1202
        %v1351 = vpop.f32.mrb[0].mxu0
        %v1352 = vadd.f32 %v1228, %v1351
        %v1353 = vpop.f32.mrb[0].mxu0
        %1354 = vmatprep.mubr.f32.mxu0 0.0
        %1355 = vmatmul.mubr.f32.gmra.mrb[0].mxu0 %v1203
        %v1356 = vpop.f32.mrb[0].mxu0
        %v1357 = vadd.f32 %v1228, %v1356
        %v1358 = vpop.f32.mrb[0].mxu0
        %1359 = vmatprep.mubr.f32.mxu0 0.0
        %1360 = vmatmul.mubr.f32.gmra.mrb[0].mxu0 %v1204
        %v1361 = vpop.f32.mrb[0].mxu0
        %v1362 = vadd.f32 %v1228, %v1361
        %v1363 = vpop.f32.mrb[0].mxu0
        %1364 = vmatprep.mubr.f32.mxu0 0.0
        %1365 = vmatmul.mubr.f32.gmra.mrb[0].mxu0 %v1205
        %v1366 = vpop.f32.mrb[0].mxu0
        %v1367 = vadd.f32 %v1228, %v1366
        %v1368 = vpop.f32.mrb[0].mxu0
        %1369 = vmatprep.mubr.f32.mxu0 0.0
        %1370 = vmatmul.mubr.f32.gmra.mrb[0].mxu0 %v1206
        %v1371 = vpop.f32.mrb[0].mxu0
        %v1372 = vadd.f32 %v1228, %v1371
        %v1373 = vpop.f32.mrb[0].mxu0
        %1374 = vdwg.mxu0
        %1375 = vmax.xlane.f32.xlu0 %v1297
        %v1376 = vpop.xlane.xlu0 %1375
        %1377 = vmax.xlane.f32.xlu0 %v1302
        %v1378 = vpop.xlane.xlu0 %1377
        %1379 = vmax.xlane.f32.xlu0 %v1307
        %v1380 = vpop.xlane.xlu0 %1379
        %1381 = vmax.xlane.f32.xlu0 %v1312
        %v1382 = vpop.xlane.xlu0 %1381
        %1383 = vmax.xlane.f32.xlu0 %v1317
        %v1384 = vpop.xlane.xlu0 %1383
        %1385 = vmax.xlane.f32.xlu0 %v1322
        %v1386 = vpop.xlane.xlu0 %1385
        %1387 = vmax.xlane.f32.xlu0 %v1327
        %v1388 = vpop.xlane.xlu0 %1387
        %1389 = vmax.xlane.f32.xlu0 %v1332
        %v1390 = vpop.xlane.xlu0 %1389
        %1391 = vmax.xlane.f32.xlu0 %v1337
        %v1392 = vpop.xlane.xlu0 %1391
        %1393 = vmax.xlane.f32.xlu0 %v1342
        %v1394 = vpop.xlane.xlu0 %1393
        %1395 = vmax.xlane.f32.xlu0 %v1347
        %v1396 = vpop.xlane.xlu0 %1395
        %1397 = vmax.xlane.f32.xlu0 %v1352
        %v1398 = vpop.xlane.xlu0 %1397
        %1399 = vmax.xlane.f32.xlu0 %v1357
        %v1400 = vpop.xlane.xlu0 %1399
        %1401 = vmax.xlane.f32.xlu0 %v1362
        %v1402 = vpop.xlane.xlu0 %1401
        %1403 = vmax.xlane.f32.xlu0 %v1367
        %v1404 = vpop.xlane.xlu0 %1403
        %1405 = vmax.xlane.f32.xlu0 %v1372
        %v1406 = vpop.xlane.xlu0 %1405
        %v1407 = vsub.f32 %v1297, %v1376
        %v1408 = vsub.f32 %v1302, %v1378
        %v1409 = vsub.f32 %v1307, %v1380
        %v1410 = vsub.f32 %v1312, %v1382
        %v1411 = vsub.f32 %v1317, %v1384
        %v1412 = vsub.f32 %v1322, %v1386
        %v1413 = vsub.f32 %v1327, %v1388
        %v1414 = vsub.f32 %v1332, %v1390
        %v1415 = vsub.f32 %v1337, %v1392
        %v1416 = vsub.f32 %v1342, %v1394
        %v1417 = vsub.f32 %v1347, %v1396
        %v1418 = vsub.f32 %v1352, %v1398
        %v1419 = vsub.f32 %v1357, %v1400
        %v1420 = vsub.f32 %v1362, %v1402
        %v1421 = vsub.f32 %v1367, %v1404
        %v1422 = vsub.f32 %v1372, %v1406
        %v1423 = vmul.f32 %v1407, 1.442695
        %v1424 = vpow.pop %v1423
        %v1425 = vmul.f32 %v1408, 1.442695
        %v1426 = vpow.pop %v1425
        %v1427 = vmul.f32 %v1409, 1.442695
        %v1428 = vpow.pop %v1427
        %v1429 = vmul.f32 %v1410, 1.442695
        %v1430 = vpow.pop %v1429
        %v1431 = vmul.f32 %v1411, 1.442695
        %v1432 = vpow.pop %v1431
        %v1433 = vmul.f32 %v1412, 1.442695
        %v1434 = vpow.pop %v1433
        %v1435 = vmul.f32 %v1413, 1.442695
        %v1436 = vpow.pop %v1435
        %v1437 = vmul.f32 %v1414, 1.442695
        %v1438 = vpow.pop %v1437
        %v1439 = vmul.f32 %v1415, 1.442695
        %v1440 = vpow.pop %v1439
        %v1441 = vmul.f32 %v1416, 1.442695
        %v1442 = vpow.pop %v1441
        %v1443 = vmul.f32 %v1417, 1.442695
        %v1444 = vpow.pop %v1443
        %v1445 = vmul.f32 %v1418, 1.442695
        %v1446 = vpow.pop %v1445
        %v1447 = vmul.f32 %v1419, 1.442695
        %v1448 = vpow.pop %v1447
        %v1449 = vmul.f32 %v1420, 1.442695
        %v1450 = vpow.pop %v1449
        %v1451 = vmul.f32 %v1421, 1.442695
        %v1452 = vpow.pop %v1451
        %v1453 = vmul.f32 %v1422, 1.442695
        %v1454 = vpow.pop %v1453
        %1455 = vadd.xlane.f32.xlu0 %v1424
        %v1456 = vpop.xlane.xlu0 %1455
        %1457 = vadd.xlane.f32.xlu0 %v1426
        %v1458 = vpop.xlane.xlu0 %1457
        %1459 = vadd.xlane.f32.xlu0 %v1428
        %v1460 = vpop.xlane.xlu0 %1459
        %1461 = vadd.xlane.f32.xlu0 %v1430
        %v1462 = vpop.xlane.xlu0 %1461
        %1463 = vadd.xlane.f32.xlu0 %v1432
        %v1464 = vpop.xlane.xlu0 %1463
        %1465 = vadd.xlane.f32.xlu0 %v1434
        %v1466 = vpop.xlane.xlu0 %1465
        %1467 = vadd.xlane.f32.xlu0 %v1436
        %v1468 = vpop.xlane.xlu0 %1467
        %1469 = vadd.xlane.f32.xlu0 %v1438
        %v1470 = vpop.xlane.xlu0 %1469
        %1471 = vadd.xlane.f32.xlu0 %v1440
        %v1472 = vpop.xlane.xlu0 %1471
        %1473 = vadd.xlane.f32.xlu0 %v1442
        %v1474 = vpop.xlane.xlu0 %1473
        %1475 = vadd.xlane.f32.xlu0 %v1444
        %v1476 = vpop.xlane.xlu0 %1475
        %1477 = vadd.xlane.f32.xlu0 %v1446
        %v1478 = vpop.xlane.xlu0 %1477
        %1479 = vadd.xlane.f32.xlu0 %v1448
        %v1480 = vpop.xlane.xlu0 %1479
        %1481 = vadd.xlane.f32.xlu0 %v1450
        %v1482 = vpop.xlane.xlu0 %1481
        %1483 = vadd.xlane.f32.xlu0 %v1452
        %v1484 = vpop.xlane.xlu0 %1483
        %1485 = vadd.xlane.f32.xlu0 %v1454
        %v1486 = vpop.xlane.xlu0 %1485
        %v1487 = vrcp.pop %v1456
        %v1488 = vrcp.pop %v1458
        %v1489 = vrcp.pop %v1460
        %v1490 = vrcp.pop %v1462
        %v1491 = vrcp.pop %v1464
        %v1492 = vrcp.pop %v1466
        %v1493 = vrcp.pop %v1468
        %v1494 = vrcp.pop %v1470
        %v1495 = vrcp.pop %v1472
        %v1496 = vrcp.pop %v1474
        %v1497 = vrcp.pop %v1476
        %v1498 = vrcp.pop %v1478
        %v1499 = vrcp.pop %v1480
        %v1500 = vrcp.pop %v1482
        %v1501 = vrcp.pop %v1484
        %v1502 = vrcp.pop %v1486
        %v1503 = vmul.f32 %v1424, %v1487
        %v1504 = vmul.f32 %v1426, %v1488
        %v1505 = vmul.f32 %v1428, %v1489
        %v1506 = vmul.f32 %v1430, %v1490
        %v1507 = vmul.f32 %v1432, %v1491
        %v1508 = vmul.f32 %v1434, %v1492
        %v1509 = vmul.f32 %v1436, %v1493
        %v1510 = vmul.f32 %v1438, %v1494
        %v1511 = vmul.f32 %v1440, %v1495
        %v1512 = vmul.f32 %v1442, %v1496
        %v1513 = vmul.f32 %v1444, %v1497
        %v1514 = vmul.f32 %v1446, %v1498
        %v1515 = vmul.f32 %v1448, %v1499
        %v1516 = vmul.f32 %v1450, %v1500
        %v1517 = vmul.f32 %v1452, %v1501
        %v1518 = vmul.f32 %v1454, %v1502
        %1519 = vst [vmem:[%s410] sm:$0xff] %v1503
        %1520 = vst [vmem:[%s410 + $0x8] sm:$0xff] %v1504
        %1521 = vst [vmem:[%s410 + $0x10] sm:$0xff] %v1505
        %1522 = vst [vmem:[%s410 + $0x18] sm:$0xff] %v1506
        %1523 = vst [vmem:[%s410 + $0x20] sm:$0xff] %v1507
        %1524 = vst [vmem:[%s410 + $0x28] sm:$0xff] %v1508
        %1525 = vst [vmem:[%s410 + $0x30] sm:$0xff] %v1509
        %1526 = vst [vmem:[%s410 + $0x38] sm:$0xff] %v1510
        %1527 = vst [vmem:[%s410 + $0x40] sm:$0xff] %v1511
        %1528 = vst [vmem:[%s410 + $0x48] sm:$0xff] %v1512
        %1529 = vst [vmem:[%s410 + $0x50] sm:$0xff] %v1513
        %1530 = vst [vmem:[%s410 + $0x58] sm:$0xff] %v1514
        %1531 = vst [vmem:[%s410 + $0x60] sm:$0xff] %v1515
        %1532 = vst [vmem:[%s410 + $0x68] sm:$0xff] %v1516
        %1533 = vst [vmem:[%s410 + $0x70] sm:$0xff] %v1517
        %1534 = vst [vmem:[%s410 + $0x78] sm:$0xff] %v1518
        %s1535 = sand.u32 %s271, 1
        %s1536 = scalar_lea.sflag [#allocation4], %s1535
        %s1537 = sand.u32 %s271, 1
        %s1538 = smul.addr %s1537, 128
        %s1539 = scalar_lea.vmem [#allocation7], %s1538
        // Predicated region
        $region73: #{tpu_custom_call.1} parent=63 // pred_check
          %p1540 = pneg %p281
        $region74: #{tpu_custom_call.1} parent=63 // pred_check_branch
          %1542 = sbr.rel (%p1540) target = $region76
        $region75: #{tpu_custom_call.1} parent=63 // pred_region
          %s1543 = smul.u32 16, %s27
          %s1545 = ssub.s32 2048, 2048
          %1546 = vsyncadd %s1536, %s1545
          %s1547 = smul.addr %s1543, 128
          %s1548 = scalar_lea.hbm %s11, %s1547
          %s1549 = sshll.u32 %s1539, 4
          %s1550 = int_to_ptr.vmem [resolvable:$true] %s1549
          %1555 = dma.vmem_to_hbm [thread:$0]  %s1550, 2048, %s1548, %s1536, 128, 128, 8
        $region76: #{tpu_custom_call.1} parent=63 // pred_fallthru
          _
      $region64: #{tpu_custom_call.1} parent=5 // pred_fallthru
        _
      %p1556 = scmp.le.s32.totalorder 2, %s22
      // Predicated region
      $region77: #{tpu_custom_call.1} parent=5 // pred_check
        %p1557 = pneg %p1556
      $region78: #{tpu_custom_call.1} parent=5 // pred_check_branch
        %1559 = sbr.rel (%p1557) target = $region80
      $region79: #{tpu_custom_call.1} parent=5 // pred_region
        %s1560 = ssub.s32 %s22, 2
        // Predicated region
        $region81: #{tpu_custom_call.1} parent=79 // pred_check
          %p1561 = pneg %p287
        $region82: #{tpu_custom_call.1} parent=79 // pred_check_branch
          %1563 = sbr.rel (%p1561) target = $region84
        $region83: #{tpu_custom_call.1} parent=79 // pred_region
          %s1564 = sand.u32 %s272, 1
          %s1565 = scalar_lea.sflag [#allocation4], %s1564
          %s1566 = sand.u32 %s272, 1
          %s1567 = smul.addr %s1566, 128
          %s1568 = scalar_lea.vmem [#allocation7], %s1567
          %1569 = dma.done %s1565, 2048
        $region84: #{tpu_custom_call.1} parent=79 // pred_fallthru
          _
      $region80: #{tpu_custom_call.1} parent=5 // pred_fallthru
        _
    $region6: #{tpu_custom_call.1} parent=1 // loop_footer
      %s26 = sadd.s32 1, %s22
    $region7: #{tpu_custom_call.1} parent=1 // loop_footer_branch
      %21 = sbr.rel target = $region3
    $region8: #{tpu_custom_call.1} parent=1 // loop_exit
      _
    %1570 = vsyncpa [#allocation3], 1
    %s1571 = scalar_lea.sflag [#allocation3], 1
    %1572 = vsyncpa %s1571, 1
    %1573 = vsyncpa [#allocation6], 1
    %1574 = vsyncpa [#allocation4], 1
    %s1575 = scalar_lea.sflag [#allocation4], 1
    %1576 = vsyncpa %s1575, 1

</llo_original>
